<compile_context>
chip_gen: v7x
topology: tpu7x:2x2x1
jax: 0.10.0
libtpu: 0.0.40
codegen_flags: <defaults>
</compile_context>

<pallas_src>
import jax
import jax.numpy as jnp
import numpy as np
from jax.experimental import pallas as pl
from jax.experimental.pallas import tpu as pltpu


def _round_up(x, m):
    return ((x + m - 1) // m) * m


def kernel_gen_kernel(xT_ref, sdT_ref, dc_ref,
                      w_in_ref, b_in_ref,
                      w_out_ref, b_out_ref,
                      w_fc_ref, b_fc_ref,
                      out_ref):
    # xT_ref : (D, tE)     edge features, edges on the lane axis
    # sdT_ref: (1, tE)     sqrt(deg) gathered at edge targets
    # dc_ref : (G*D, 2)    fused degree-scaler coefficients (col 0 / col 1)
    # w_*_ref: block-diagonal fused weights, transposed for W @ x form
    # out_ref: (G*H, tE)   lane-dense output slab
    x0 = xT_ref[...]                                   # (D, tE) f32
    sd = sdT_ref[...]                                  # (1, tE) f32
    dc = dc_ref[...]                                   # (G*D, 2)
    c0 = dc[:, 0:1]                                    # (G*D, 1)
    c1 = dc[:, 1:2]                                    # (G*D, 1)

    g = dc.shape[0] // x0.shape[0]                     # static at trace time
    # replicate shared edge features across the fused group axis (sublanes)
    x_rep = jnp.concatenate([x0] * g, axis=0)          # (G*D, tE)
    # deg scaling: conv_loc * (c0 + sqrt_deg * c1)   (single fused multiply)
    x = x_rep * (c0 + sd * c1)                         # (G*D, tE) f32

    mm_dtype = w_in_ref.dtype                          # bf16 (perf) or f32

    # MLP block: h = relu(W_in x + b_in); h = W_out h + b_out; x = x + h
    h = jnp.dot(w_in_ref[...], x.astype(mm_dtype),
                preferred_element_type=jnp.float32) + b_in_ref[...]
    h = jnp.maximum(h, 0.0)
    h = jnp.dot(w_out_ref[...], h.astype(mm_dtype),
                preferred_element_type=jnp.float32) + b_out_ref[...]
    x = x + h

    # final act + head projection
    x = jnp.maximum(x, 0.0)
    out = jnp.dot(w_fc_ref[...], x.astype(mm_dtype),
                  preferred_element_type=jnp.float32) + b_fc_ref[...]
    out_ref[...] = out.astype(out_ref.dtype)


def kernel_generator_forward(edge_attr, sqrt_deg_edges, deg_coef,
                             w_in, b_in, w_out, b_out, w_fc, b_fc,
                             *, block_e=512, matmul_dtype=jnp.bfloat16):
    """Returns conv_kernel of shape (num_groups, E, num_heads, 1)."""
    E, D = edge_attr.shape
    G, _, F = w_in.shape
    H = w_fc.shape[2]
    GD, GF, GH = G * D, G * F, G * H

    # ---- wrapper-side layout plumbing (tiny, one-time XLA ops) ----
    # block-diagonal group fusion, transposed for feature-major compute:
    #   Wt[(g, o), (g, i)] = w[g, i, o]
    def block_diag_t(w):
        g, din, dout = w.shape
        eye = jnp.eye(g, dtype=w.dtype)
        bd = jnp.einsum('gio,gh->gohi', w, eye)        # (G, dout, G, din)
        return bd.reshape(g * dout, g * din)

    w_in_t = block_diag_t(w_in).astype(matmul_dtype)   # (GF, GD)
    w_out_t = block_diag_t(w_out).astype(matmul_dtype) # (GD, GF)
    w_fc_t = block_diag_t(w_fc).astype(matmul_dtype)   # (GH, GD)
    b_in_t = b_in.reshape(GF, 1).astype(jnp.float32)
    b_out_t = b_out.reshape(GD, 1).astype(jnp.float32)
    b_fc_t = b_fc.reshape(GH, 1).astype(jnp.float32)
    # deg_coef (G,2,D) -> (G*D, 2): row g*D+d, col k = deg_coef[g,k,d]
    dc_t = deg_coef.transpose(0, 2, 1).reshape(GD, 2).astype(jnp.float32)

    # feature-major activations: edges on the lane axis
    xT = edge_attr.T.astype(jnp.float32)               # (D, E)
    sdT = sqrt_deg_edges.reshape(1, E).astype(jnp.float32)

    # edge-tile size: multiple of 128 (lane-dense stores / (8,128) rule)
    tE = min(block_e, _round_up(E, 128))
    tE = _round_up(tE, 128)
    E_pad = _round_up(E, tE)
    if E_pad != E:
        xT = jnp.pad(xT, ((0, 0), (0, E_pad - E)))
        sdT = jnp.pad(sdT, ((0, 0), (0, E_pad - E)))

    grid = (E_pad // tE,)

    outT = pl.pallas_call(
        kernel_gen_kernel,
        out_shape=jax.ShapeDtypeStruct((GH, E_pad), jnp.float32),
        grid_spec=pltpu.PrefetchScalarGridSpec(
            num_scalar_prefetch=0,
            grid=grid,
            in_specs=[
                pl.BlockSpec((D, tE), lambda i: (0, i)),    # edge_attr^T tile
                pl.BlockSpec((1, tE), lambda i: (0, i)),    # sqrt_deg^T tile
                pl.BlockSpec((GD, 2), lambda i: (0, 0)),    # fused deg_coef
                pl.BlockSpec((GF, GD), lambda i: (0, 0)),   # W_in  (blockdiag)
                pl.BlockSpec((GF, 1), lambda i: (0, 0)),    # b_in
                pl.BlockSpec((GD, GF), lambda i: (0, 0)),   # W_out (blockdiag)
                pl.BlockSpec((GD, 1), lambda i: (0, 0)),    # b_out
                pl.BlockSpec((GH, GD), lambda i: (0, 0)),   # W_fc  (blockdiag)
                pl.BlockSpec((GH, 1), lambda i: (0, 0)),    # b_fc
            ],
            out_specs=pl.BlockSpec((GH, tE), lambda i: (0, i)),
        ),
        compiler_params=pltpu.CompilerParams(
            dimension_semantics=("parallel",)),
    )(xT, sdT, dc_t, w_in_t, b_in_t, w_out_t, b_out_t, w_fc_t, b_fc_t)

    # (G*H, E) -> (G, E, H, 1)
    out = outT[:, :E].reshape(G, H, E).transpose(0, 2, 1)
    return out[..., None]

# TODO(synk): deg_scaler=False branch (replicate_vec broadcast, no deg scaling)
# is not implemented; the module default (deg_scaler=True) is covered.


def reference_forward(edge_attr, sqrt_deg_edges, deg_coef,
                      w_in, b_in, w_out, b_out, w_fc, b_fc):
    # pure-JAX f32 reference of the same math (per-group einsum)
    x0 = edge_attr[None, :, :]                                  # (1, E, D)
    x = x0 * deg_coef[:, 0:1, :] + x0 * sqrt_deg_edges[None] * deg_coef[:, 1:2, :]
    h = jnp.einsum('ged,gdf->gef', x, w_in) + b_in
    h = jnp.maximum(h, 0.0)
    h = jnp.einsum('gef,gfd->ged', h, w_out) + b_out
    x = x + h
    x = jnp.maximum(x, 0.0)
    out = jnp.einsum('ged,gdh->geh', x, w_fc) + b_fc
    return out[..., None]


if __name__ == "__main__":
    # config consistent with the module structure:
    #   dim_hidden=32, n_heads=8 -> out_dim=4, hid_dim=32
    #   layers (num_groups)=4, n_mlp_blocks=1, ffn_ratio=1.0, act=relu
    dim_hidden = 32
    num_heads = 8
    hid_dim = (dim_hidden // num_heads) * num_heads   # 32
    ffn_dim = int(hid_dim * 1.0)                      # 32
    num_groups = 4                                    # G*D = 128 (full MXU K)
    num_nodes = 64
    num_edges = 2048                                  # tiled: 4 tiles of 512

    key = jax.random.PRNGKey(0)
    keys = jax.random.split(key, 10)

    # graph data
    edge_index = jax.random.randint(keys[0], (2, num_edges), 0, num_nodes)
    edge_attr = jax.random.normal(keys[1], (num_edges, hid_dim), jnp.float32)
    deg = jax.random.uniform(keys[2], (num_nodes,), jnp.float32, 1.0, 8.0)

    # get_sqrt_deg + gather at edge targets (glue done in plain JAX)
    sqrt_deg = jnp.sqrt(deg).reshape(num_nodes, 1)
    index = edge_index[1]
    sqrt_deg_edges = sqrt_deg[index]                  # (E, 1)

    # parameters (deterministic synthetic init mirroring the module's shapes)
    sqrt_g = np.sqrt(num_groups).astype(np.float32)
    kaiming_std = np.sqrt(2.0 / hid_dim).astype(np.float32)
    xav_std_out = np.sqrt(2.0 / (ffn_dim + hid_dim)).astype(np.float32)
    xav_std_fc = np.sqrt(2.0 / (hid_dim + num_heads)).astype(np.float32)

    w_in = jax.random.normal(keys[3], (num_groups, hid_dim, ffn_dim), jnp.float32) * kaiming_std * sqrt_g
    b_in = jnp.zeros((num_groups, 1, ffn_dim), jnp.float32)
    w_out = jax.random.normal(keys[4], (num_groups, ffn_dim, hid_dim), jnp.float32) * xav_std_out * sqrt_g
    b_out = jnp.zeros((num_groups, 1, hid_dim), jnp.float32)
    w_fc = jax.random.normal(keys[5], (num_groups, hid_dim, num_heads), jnp.float32) * xav_std_fc * sqrt_g
    b_fc = jnp.zeros((num_groups, 1, num_heads), jnp.float32)

    xav_std_dc = np.sqrt(2.0 / (num_groups + hid_dim)).astype(np.float32)
    deg_coef = jax.random.normal(keys[6], (num_groups, 2, hid_dim), jnp.float32) * xav_std_dc * sqrt_g

    ref = jax.block_until_ready(reference_forward(
        edge_attr, sqrt_deg_edges, deg_coef,
        w_in, b_in, w_out, b_out, w_fc, b_fc))

    # 1) exact-semantics check: f32 matmul operands, tight tolerance
    score_f32 = kernel_generator_forward(
        edge_attr, sqrt_deg_edges, deg_coef,
        w_in, b_in, w_out, b_out, w_fc, b_fc,
        matmul_dtype=jnp.float32)
    score_f32 = jax.block_until_ready(score_f32)
    assert score_f32.shape == (num_groups, num_edges, num_heads, 1)
    np.testing.assert_allclose(np.asarray(score_f32), np.asarray(ref),
                               rtol=2e-4, atol=2e-4)

    # 2) perf path (v6e/v7x): bf16 MXU operands, f32 accumulation
    score_bf16 = kernel_generator_forward(
        edge_attr, sqrt_deg_edges, deg_coef,
        w_in, b_in, w_out, b_out, w_fc, b_fc,
        matmul_dtype=jnp.bfloat16)
    score_bf16 = jax.block_until_ready(score_bf16)
    assert score_bf16.shape == (num_groups, num_edges, num_heads, 1)
    max_err = float(jnp.max(jnp.abs(score_bf16 - ref)))
    scale = float(jnp.max(jnp.abs(ref)))
    assert max_err <= 3e-2 * scale + 1e-3, (max_err, scale)

    print("KERNEL_OK")
</pallas_src>

<mosaic_0001>
module attributes {stable_mosaic.version = 11 : i64} {
  func.func @kernel_gen_kernel(%arg0: i32, %arg1: memref<32x512xf32, #tpu.memory_space<vmem>>, %arg2: memref<1x512xf32, #tpu.memory_space<vmem>>, %arg3: memref<128x2xf32, #tpu.memory_space<vmem>>, %arg4: memref<128x128xf32, #tpu.memory_space<vmem>>, %arg5: memref<128x1xf32, #tpu.memory_space<vmem>>, %arg6: memref<128x128xf32, #tpu.memory_space<vmem>>, %arg7: memref<128x1xf32, #tpu.memory_space<vmem>>, %arg8: memref<32x128xf32, #tpu.memory_space<vmem>>, %arg9: memref<32x1xf32, #tpu.memory_space<vmem>>, %arg10: memref<32x512xf32, #tpu.memory_space<vmem>>) attributes {dimension_semantics = [#tpu.dimension_semantics<parallel>], iteration_bounds = array<i64: 4>, scalar_prefetch = 0 : i64, scratch_operands = 0 : i64, tpu.core_type = #tpu.core_type<tc>, window_params = [{transform_indices = @transform_0, window_bounds = array<i64: 32, 512>}, {transform_indices = @transform_1, window_bounds = array<i64: 1, 512>}, {pipeline_mode = #tpu.pipeline_mode<synchronous>, transform_indices = @transform_2, window_bounds = array<i64: 128, 2>}, {pipeline_mode = #tpu.pipeline_mode<synchronous>, transform_indices = @transform_3, window_bounds = array<i64: 128, 128>}, {pipeline_mode = #tpu.pipeline_mode<synchronous>, transform_indices = @transform_4, window_bounds = array<i64: 128, 1>}, {pipeline_mode = #tpu.pipeline_mode<synchronous>, transform_indices = @transform_5, window_bounds = array<i64: 128, 128>}, {pipeline_mode = #tpu.pipeline_mode<synchronous>, transform_indices = @transform_6, window_bounds = array<i64: 128, 1>}, {pipeline_mode = #tpu.pipeline_mode<synchronous>, transform_indices = @transform_7, window_bounds = array<i64: 32, 128>}, {pipeline_mode = #tpu.pipeline_mode<synchronous>, transform_indices = @transform_8, window_bounds = array<i64: 32, 1>}, {transform_indices = @transform_9, window_bounds = array<i64: 32, 512>}]} {
    %c0 = arith.constant 0 : index
    %c0_0 = arith.constant 0 : index
    %0 = vector.load %arg1[%c0, %c0_0] : memref<32x512xf32, #tpu.memory_space<vmem>>, vector<32x512xf32>
    %c0_1 = arith.constant 0 : index
    %c0_2 = arith.constant 0 : index
    %1 = vector.load %arg2[%c0_1, %c0_2] : memref<1x512xf32, #tpu.memory_space<vmem>>, vector<1x512xf32>
    %c0_3 = arith.constant 0 : index
    %c0_4 = arith.constant 0 : index
    %2 = vector.load %arg3[%c0_3, %c0_4] : memref<128x2xf32, #tpu.memory_space<vmem>>, vector<128x2xf32>
    %3 = vector.extract_strided_slice %2 {offsets = [0, 0], sizes = [128, 1], strides = [1, 1]} : vector<128x2xf32> to vector<128x1xf32>
    %4 = vector.extract_strided_slice %2 {offsets = [0, 1], sizes = [128, 1], strides = [1, 1]} : vector<128x2xf32> to vector<128x1xf32>
    %5 = tpu.concatenate %0, %0, %0, %0 in 0 : vector<32x512xf32>, vector<32x512xf32>, vector<32x512xf32>, vector<32x512xf32> -> vector<128x512xf32>
    %6 = vector.broadcast %1 : vector<1x512xf32> to vector<128x512xf32>
    %7 = vector.broadcast %4 : vector<128x1xf32> to vector<128x512xf32>
    %8 = arith.mulf %6, %7 : vector<128x512xf32>
    %9 = vector.broadcast %3 : vector<128x1xf32> to vector<128x512xf32>
    %10 = arith.addf %9, %8 : vector<128x512xf32>
    %11 = arith.mulf %5, %10 : vector<128x512xf32>
    %c0_5 = arith.constant 0 : index
    %c0_6 = arith.constant 0 : index
    %12 = vector.load %arg4[%c0_5, %c0_6] : memref<128x128xf32, #tpu.memory_space<vmem>>, vector<128x128xf32>
    %cst = arith.constant dense<0.000000e+00> : vector<128x512xf32>
    %13 = tpu.matmul %12, %11, %cst {dimension_numbers = #tpu.dot_dimension_numbers<[1], [0], [0], [1], [0, 0, 1, 1], [], []>} : vector<128x128xf32>, vector<128x512xf32>, vector<128x512xf32> -> vector<128x512xf32>
    %c0_7 = arith.constant 0 : index
    %c0_8 = arith.constant 0 : index
    %14 = vector.load %arg5[%c0_7, %c0_8] : memref<128x1xf32, #tpu.memory_space<vmem>>, vector<128x1xf32>
    %15 = vector.broadcast %14 : vector<128x1xf32> to vector<128x512xf32>
    %16 = arith.addf %13, %15 : vector<128x512xf32>
    %cst_9 = arith.constant 0.000000e+00 : f32
    %17 = vector.broadcast %cst_9 : f32 to vector<128x512xf32>
    %18 = arith.maximumf %16, %17 : vector<128x512xf32>
    %c0_10 = arith.constant 0 : index
    %c0_11 = arith.constant 0 : index
    %19 = vector.load %arg6[%c0_10, %c0_11] : memref<128x128xf32, #tpu.memory_space<vmem>>, vector<128x128xf32>
    %cst_12 = arith.constant dense<0.000000e+00> : vector<128x512xf32>
    %20 = tpu.matmul %19, %18, %cst_12 {dimension_numbers = #tpu.dot_dimension_numbers<[1], [0], [0], [1], [0, 0, 1, 1], [], []>} : vector<128x128xf32>, vector<128x512xf32>, vector<128x512xf32> -> vector<128x512xf32>
    %c0_13 = arith.constant 0 : index
    %c0_14 = arith.constant 0 : index
    %21 = vector.load %arg7[%c0_13, %c0_14] : memref<128x1xf32, #tpu.memory_space<vmem>>, vector<128x1xf32>
    %22 = vector.broadcast %21 : vector<128x1xf32> to vector<128x512xf32>
    %23 = arith.addf %20, %22 : vector<128x512xf32>
    %24 = arith.addf %11, %23 : vector<128x512xf32>
    %cst_15 = arith.constant 0.000000e+00 : f32
    %25 = vector.broadcast %cst_15 : f32 to vector<128x512xf32>
    %26 = arith.maximumf %24, %25 : vector<128x512xf32>
    %c0_16 = arith.constant 0 : index
    %c0_17 = arith.constant 0 : index
    %27 = vector.load %arg8[%c0_16, %c0_17] : memref<32x128xf32, #tpu.memory_space<vmem>>, vector<32x128xf32>
    %cst_18 = arith.constant dense<0.000000e+00> : vector<32x512xf32>
    %28 = tpu.matmul %27, %26, %cst_18 {dimension_numbers = #tpu.dot_dimension_numbers<[1], [0], [0], [1], [0, 0, 1, 1], [], []>} : vector<32x128xf32>, vector<128x512xf32>, vector<32x512xf32> -> vector<32x512xf32>
    %c0_19 = arith.constant 0 : index
    %c0_20 = arith.constant 0 : index
    %29 = vector.load %arg9[%c0_19, %c0_20] : memref<32x1xf32, #tpu.memory_space<vmem>>, vector<32x1xf32>
    %30 = vector.broadcast %29 : vector<32x1xf32> to vector<32x512xf32>
    %31 = arith.addf %28, %30 : vector<32x512xf32>
    %c0_21 = arith.constant 0 : index
    %c0_22 = arith.constant 0 : index
    %32 = vector.load %arg10[%c0_21, %c0_22] : memref<32x512xf32, #tpu.memory_space<vmem>>, vector<32x512xf32>
    tpu.vector_store %arg10[%c0_21, %c0_22], %31 {strides = array<i32>} : memref<32x512xf32, #tpu.memory_space<vmem>>, vector<32x512xf32>,
    return
  }
  func.func @transform_0(%arg0: i32) -> (i32, i32) {
    %c0_i32 = arith.constant 0 : i32
    %c0_i32_0 = arith.constant 0 : i32
    return %c0_i32, %arg0 : i32, i32
  }
  func.func @transform_1(%arg0: i32) -> (i32, i32) {
    %c0_i32 = arith.constant 0 : i32
    %c0_i32_0 = arith.constant 0 : i32
    return %c0_i32, %arg0 : i32, i32
  }
  func.func @transform_2(%arg0: i32) -> (i32, i32) {
    %c0_i32 = arith.constant 0 : i32
    %c0_i32_0 = arith.constant 0 : i32
    %c0_i32_1 = arith.constant 0 : i32
    return %c0_i32, %c0_i32_0 : i32, i32
  }
  func.func @transform_3(%arg0: i32) -> (i32, i32) {
    %c0_i32 = arith.constant 0 : i32
    %c0_i32_0 = arith.constant 0 : i32
    %c0_i32_1 = arith.constant 0 : i32
    return %c0_i32, %c0_i32_0 : i32, i32
  }
  func.func @transform_4(%arg0: i32) -> (i32, i32) {
    %c0_i32 = arith.constant 0 : i32
    %c0_i32_0 = arith.constant 0 : i32
    %c0_i32_1 = arith.constant 0 : i32
    return %c0_i32, %c0_i32_0 : i32, i32
  }
  func.func @transform_5(%arg0: i32) -> (i32, i32) {
    %c0_i32 = arith.constant 0 : i32
    %c0_i32_0 = arith.constant 0 : i32
    %c0_i32_1 = arith.constant 0 : i32
    return %c0_i32, %c0_i32_0 : i32, i32
  }
  func.func @transform_6(%arg0: i32) -> (i32, i32) {
    %c0_i32 = arith.constant 0 : i32
    %c0_i32_0 = arith.constant 0 : i32
    %c0_i32_1 = arith.constant 0 : i32
    return %c0_i32, %c0_i32_0 : i32, i32
  }
  func.func @transform_7(%arg0: i32) -> (i32, i32) {
    %c0_i32 = arith.constant 0 : i32
    %c0_i32_0 = arith.constant 0 : i32
    %c0_i32_1 = arith.constant 0 : i32
    return %c0_i32, %c0_i32_0 : i32, i32
  }
  func.func @transform_8(%arg0: i32) -> (i32, i32) {
    %c0_i32 = arith.constant 0 : i32
    %c0_i32_0 = arith.constant 0 : i32
    %c0_i32_1 = arith.constant 0 : i32
    return %c0_i32, %c0_i32_0 : i32, i32
  }
  func.func @transform_9(%arg0: i32) -> (i32, i32) {
    %c0_i32 = arith.constant 0 : i32
    %c0_i32_0 = arith.constant 0 : i32
    return %c0_i32, %arg0 : i32, i32
  }
}

</mosaic_0001>

<llo_original>
// kernel: tpu_custom_call.1
$region0: #{tpu_custom_call.1}
  #allocation0 [shape = 'u32[]', space=smem, size = 0x4, offset = 0x4, fixed_abs, tag = 'smem constant byte address 0x4 - core index']
  #allocation1 [shape = 'u32[144,128]{1,0:T(1,128)}', space=vmem, size = 0x12000, scoped, tag = 'internal scratch']
  %s0 = inlined_call_operand.hbm [shape: f32[32,2048], index: 0, kind: input, shape index: {}]
  %s1 = inlined_call_operand.vmem [shape: f32[1,2048], index: 1, kind: input, shape index: {}]
  %s2 = inlined_call_operand.vmem [shape: f32[128,2], index: 2, kind: input, shape index: {}]
  %s3 = inlined_call_operand.vmem [shape: f32[128,128], index: 3, kind: input, shape index: {}]
  %s4 = inlined_call_operand.vmem [shape: f32[128,1], index: 4, kind: input, shape index: {}]
  %s5 = inlined_call_operand.vmem [shape: f32[128,128], index: 5, kind: input, shape index: {}]
  %s6 = inlined_call_operand.vmem [shape: f32[128,1], index: 6, kind: input, shape index: {}]
  %s7 = inlined_call_operand.vmem [shape: f32[32,128], index: 7, kind: input, shape index: {}]
  %s8 = inlined_call_operand.vmem [shape: f32[32,1], index: 8, kind: input, shape index: {}]
  %s9 = inlined_call_operand.hbm [shape: f32[32,2048], index: 9, kind: output, shape index: {}]
  %s10 = sld [smem:[#allocation0]]
  $region73: #{tpu_custom_call.1} parent=0
    _
  %s12 = ssub.s32 1, %s10
  %s13 = scalar_select 0, %s12, %s10
  $region1: #{tpu_custom_call.1} parent=0
    #allocation2 [shape = 'u8[131072]{0}', space=vmem, size = 0x20000, scoped, tag = 'input window, operand 0']
    #allocation3 [shape = 's32[2]{0}', space=sflag, size = 0x8, scoped, tag = 'scoped memory for tpu_custom_call.1']
    #allocation4 [shape = 's32[2]{0}', space=sflag, size = 0x8, scoped, tag = 'scoped memory for tpu_custom_call.1']
    #allocation5 [shape = 'u8[131072]{0}', space=vmem, size = 0x20000, scoped, tag = 'output window, operand 0']
    %14 = vsyncpa [#allocation3], 0
    %s15 = scalar_lea.sflag [#allocation3], 1
    %16 = vsyncpa %s15, 0
    %17 = vsyncpa [#allocation4], 0
    %s18 = scalar_lea.sflag [#allocation4], 1
    %19 = vsyncpa %s18, 0
    loop: start=0, step=1, limit=6
    $region2: #{tpu_custom_call.1} parent=1 // loop_pre_header
      _
    $region3: #{tpu_custom_call.1} parent=1 // loop_header
      %s21 = sphi 0, %s25
      %p22 = scmp.ge.s32.totalorder %s21, 6
      %s31 = sphi 0, %s33
      %s34 = sphi 0, %s31
      %s35 = sphi 0, %s34
      %s51 = sphi 0, %s35
      %s57 = sphi 0, %s59
      %s60 = sphi 0, %s57
      %s61 = sphi 0, %s60
      %s77 = sphi 0, %s61
      %s81 = sphi 0, %s81
      %s83 = sphi 0, %s81
      %s84 = sphi 0, %s83
      %s98 = sphi 0, %s84
      %s102 = sphi 0, %s102
      %s104 = sphi 0, %s102
      %s105 = sphi 0, %s104
      %s119 = sphi 0, %s105
      %s123 = sphi 0, %s123
      %s125 = sphi 0, %s123
      %s126 = sphi 0, %s125
      %s140 = sphi 0, %s126
      %s144 = sphi 0, %s144
      %s146 = sphi 0, %s144
      %s147 = sphi 0, %s146
      %s161 = sphi 0, %s147
      %s165 = sphi 0, %s165
      %s167 = sphi 0, %s165
      %s168 = sphi 0, %s167
      %s182 = sphi 0, %s168
      %s186 = sphi 0, %s186
      %s188 = sphi 0, %s186
      %s189 = sphi 0, %s188
      %s203 = sphi 0, %s189
      %s207 = sphi 0, %s207
      %s209 = sphi 0, %s207
      %s210 = sphi 0, %s209
      %s224 = sphi 0, %s210
      %s230 = sphi 0, %s232
      %s233 = sphi 0, %s230
      %s234 = sphi 0, %s233
      %s250 = sphi 0, %s234
    $region4: #{tpu_custom_call.1} parent=1 // loop_header_branch
      %24 = sbr.rel (%p22) target = $region8
    $region5: #{tpu_custom_call.1} parent=1 // loop_body
      %s26 = ssub.s32 %s21, 1
      %s27 = ssub.s32 %s21, 2
      %s28 = sadd.s32 %s21, 1
      %s29 = ssub.s32 %s21, %s28
      %p30 = scmp.eq.s32.totalorder %s29, 0
      %s32 = sadd.s32 %s31, 1
      %s33 = scalar_select %p30, %s31, %s32
      %p36 = pneg %p30
      %p37 = scmp.eq.s32.totalorder %s21, 3
      %p38 = por %p36, %p37
      %p39 = scmp.ne.s32.totalorder %s31, %s34
      %p40 = scmp.eq.s32.totalorder %s21, 0
      %p41 = por %p39, %p40
      %p42 = scmp.ne.s32.totalorder %s31, %s34
      %p43 = scmp.eq.s32.totalorder %s26, 3
      %p44 = por %p42, %p43
      %p45 = scmp.ne.s32.totalorder %s34, %s35
      %p46 = scmp.eq.s32.totalorder %s26, 0
      %p47 = por %p45, %p46
      %p48 = scmp.ne.s32.totalorder %s34, %s35
      %p49 = scmp.eq.s32.totalorder %s27, 3
      %p50 = por %p48, %p49
      %p52 = scmp.ne.s32.totalorder %s35, %s51
      %p53 = scmp.eq.s32.totalorder %s27, 0
      %p54 = por %p52, %p53
      %s55 = ssub.s32 %s21, %s28
      %p56 = scmp.eq.s32.totalorder %s55, 0
      %s58 = sadd.s32 %s57, 1
      %s59 = scalar_select %p56, %s57, %s58
      %p62 = pneg %p56
      %p63 = scmp.eq.s32.totalorder %s21, 3
      %p64 = por %p62, %p63
      %p65 = scmp.ne.s32.totalorder %s57, %s60
      %p66 = scmp.eq.s32.totalorder %s21, 0
      %p67 = por %p65, %p66
      %p68 = scmp.ne.s32.totalorder %s57, %s60
      %p69 = scmp.eq.s32.totalorder %s26, 3
      %p70 = por %p68, %p69
      %p71 = scmp.ne.s32.totalorder %s60, %s61
      %p72 = scmp.eq.s32.totalorder %s26, 0
      %p73 = por %p71, %p72
      %p74 = scmp.ne.s32.totalorder %s60, %s61
      %p75 = scmp.eq.s32.totalorder %s27, 3
      %p76 = por %p74, %p75
      %p78 = scmp.ne.s32.totalorder %s61, %s77
      %p79 = scmp.eq.s32.totalorder %s27, 0
      %p80 = por %p78, %p79
      %s82 = sadd.s32 %s81, 1
      %p85 = scmp.eq.s32.totalorder %s21, 3
      %p86 = scmp.ne.s32.totalorder %s81, %s83
      %p87 = scmp.eq.s32.totalorder %s21, 0
      %p88 = por %p86, %p87
      %p89 = scmp.ne.s32.totalorder %s81, %s83
      %p90 = scmp.eq.s32.totalorder %s26, 3
      %p91 = por %p89, %p90
      %p92 = scmp.ne.s32.totalorder %s83, %s84
      %p93 = scmp.eq.s32.totalorder %s26, 0
      %p94 = por %p92, %p93
      %p95 = scmp.ne.s32.totalorder %s83, %s84
      %p96 = scmp.eq.s32.totalorder %s27, 3
      %p97 = por %p95, %p96
      %p99 = scmp.ne.s32.totalorder %s84, %s98
      %p100 = scmp.eq.s32.totalorder %s27, 0
      %p101 = por %p99, %p100
      %s103 = sadd.s32 %s102, 1
      %p106 = scmp.eq.s32.totalorder %s21, 3
      %p107 = scmp.ne.s32.totalorder %s102, %s104
      %p108 = scmp.eq.s32.totalorder %s21, 0
      %p109 = por %p107, %p108
      %p110 = scmp.ne.s32.totalorder %s102, %s104
      %p111 = scmp.eq.s32.totalorder %s26, 3
      %p112 = por %p110, %p111
      %p113 = scmp.ne.s32.totalorder %s104, %s105
      %p114 = scmp.eq.s32.totalorder %s26, 0
      %p115 = por %p113, %p114
      %p116 = scmp.ne.s32.totalorder %s104, %s105
      %p117 = scmp.eq.s32.totalorder %s27, 3
      %p118 = por %p116, %p117
      %p120 = scmp.ne.s32.totalorder %s105, %s119
      %p121 = scmp.eq.s32.totalorder %s27, 0
      %p122 = por %p120, %p121
      %s124 = sadd.s32 %s123, 1
      %p127 = scmp.eq.s32.totalorder %s21, 3
      %p128 = scmp.ne.s32.totalorder %s123, %s125
      %p129 = scmp.eq.s32.totalorder %s21, 0
      %p130 = por %p128, %p129
      %p131 = scmp.ne.s32.totalorder %s123, %s125
      %p132 = scmp.eq.s32.totalorder %s26, 3
      %p133 = por %p131, %p132
      %p134 = scmp.ne.s32.totalorder %s125, %s126
      %p135 = scmp.eq.s32.totalorder %s26, 0
      %p136 = por %p134, %p135
      %p137 = scmp.ne.s32.totalorder %s125, %s126
      %p138 = scmp.eq.s32.totalorder %s27, 3
      %p139 = por %p137, %p138
      %p141 = scmp.ne.s32.totalorder %s126, %s140
      %p142 = scmp.eq.s32.totalorder %s27, 0
      %p143 = por %p141, %p142
      %s145 = sadd.s32 %s144, 1
      %p148 = scmp.eq.s32.totalorder %s21, 3
      %p149 = scmp.ne.s32.totalorder %s144, %s146
      %p150 = scmp.eq.s32.totalorder %s21, 0
      %p151 = por %p149, %p150
      %p152 = scmp.ne.s32.totalorder %s144, %s146
      %p153 = scmp.eq.s32.totalorder %s26, 3
      %p154 = por %p152, %p153
      %p155 = scmp.ne.s32.totalorder %s146, %s147
      %p156 = scmp.eq.s32.totalorder %s26, 0
      %p157 = por %p155, %p156
      %p158 = scmp.ne.s32.totalorder %s146, %s147
      %p159 = scmp.eq.s32.totalorder %s27, 3
      %p160 = por %p158, %p159
      %p162 = scmp.ne.s32.totalorder %s147, %s161
      %p163 = scmp.eq.s32.totalorder %s27, 0
      %p164 = por %p162, %p163
      %s166 = sadd.s32 %s165, 1
      %p169 = scmp.eq.s32.totalorder %s21, 3
      %p170 = scmp.ne.s32.totalorder %s165, %s167
      %p171 = scmp.eq.s32.totalorder %s21, 0
      %p172 = por %p170, %p171
      %p173 = scmp.ne.s32.totalorder %s165, %s167
      %p174 = scmp.eq.s32.totalorder %s26, 3
      %p175 = por %p173, %p174
      %p176 = scmp.ne.s32.totalorder %s167, %s168
      %p177 = scmp.eq.s32.totalorder %s26, 0
      %p178 = por %p176, %p177
      %p179 = scmp.ne.s32.totalorder %s167, %s168
      %p180 = scmp.eq.s32.totalorder %s27, 3
      %p181 = por %p179, %p180
      %p183 = scmp.ne.s32.totalorder %s168, %s182
      %p184 = scmp.eq.s32.totalorder %s27, 0
      %p185 = por %p183, %p184
      %s187 = sadd.s32 %s186, 1
      %p190 = scmp.eq.s32.totalorder %s21, 3
      %p191 = scmp.ne.s32.totalorder %s186, %s188
      %p192 = scmp.eq.s32.totalorder %s21, 0
      %p193 = por %p191, %p192
      %p194 = scmp.ne.s32.totalorder %s186, %s188
      %p195 = scmp.eq.s32.totalorder %s26, 3
      %p196 = por %p194, %p195
      %p197 = scmp.ne.s32.totalorder %s188, %s189
      %p198 = scmp.eq.s32.totalorder %s26, 0
      %p199 = por %p197, %p198
      %p200 = scmp.ne.s32.totalorder %s188, %s189
      %p201 = scmp.eq.s32.totalorder %s27, 3
      %p202 = por %p200, %p201
      %p204 = scmp.ne.s32.totalorder %s189, %s203
      %p205 = scmp.eq.s32.totalorder %s27, 0
      %p206 = por %p204, %p205
      %s208 = sadd.s32 %s207, 1
      %p211 = scmp.eq.s32.totalorder %s21, 3
      %p212 = scmp.ne.s32.totalorder %s207, %s209
      %p213 = scmp.eq.s32.totalorder %s21, 0
      %p214 = por %p212, %p213
      %p215 = scmp.ne.s32.totalorder %s207, %s209
      %p216 = scmp.eq.s32.totalorder %s26, 3
      %p217 = por %p215, %p216
      %p218 = scmp.ne.s32.totalorder %s209, %s210
      %p219 = scmp.eq.s32.totalorder %s26, 0
      %p220 = por %p218, %p219
      %p221 = scmp.ne.s32.totalorder %s209, %s210
      %p222 = scmp.eq.s32.totalorder %s27, 3
      %p223 = por %p221, %p222
      %p225 = scmp.ne.s32.totalorder %s210, %s224
      %p226 = scmp.eq.s32.totalorder %s27, 0
      %p227 = por %p225, %p226
      %s228 = ssub.s32 %s21, %s28
      %p229 = scmp.eq.s32.totalorder %s228, 0
      %s231 = sadd.s32 %s230, 1
      %s232 = scalar_select %p229, %s230, %s231
      %p235 = pneg %p229
      %p236 = scmp.eq.s32.totalorder %s21, 3
      %p237 = por %p235, %p236
      %p238 = scmp.ne.s32.totalorder %s230, %s233
      %p239 = scmp.eq.s32.totalorder %s21, 0
      %p240 = por %p238, %p239
      %p241 = scmp.ne.s32.totalorder %s230, %s233
      %p242 = scmp.eq.s32.totalorder %s26, 3
      %p243 = por %p241, %p242
      %p244 = scmp.ne.s32.totalorder %s233, %s234
      %p245 = scmp.eq.s32.totalorder %s26, 0
      %p246 = por %p244, %p245
      %p247 = scmp.ne.s32.totalorder %s233, %s234
      %p248 = scmp.eq.s32.totalorder %s27, 3
      %p249 = por %p247, %p248
      %p251 = scmp.ne.s32.totalorder %s234, %s250
      %p252 = scmp.eq.s32.totalorder %s27, 0
      %p253 = por %p251, %p252
      %p254 = scmp.le.s32.totalorder 1, %s21
      %p255 = scmp.lt.s32.totalorder %s21, 5
      %p256 = pnand %p254, %p255
      %p257 = pneg %p256
      // Predicated region
      $region9: #{tpu_custom_call.1} parent=5 // pred_check
        _
      $region10: #{tpu_custom_call.1} parent=5 // pred_check_branch
        %259 = sbr.rel (%p256) target = $region12
      $region11: #{tpu_custom_call.1} parent=5 // pred_region
        %s260 = ssub.s32 %s21, 1
        // Predicated region
        $region13: #{tpu_custom_call.1} parent=11 // pred_check
          %p261 = pneg %p94
        $region14: #{tpu_custom_call.1} parent=11 // pred_check_branch
          %263 = sbr.rel (%p261) target = $region16
        $region15: #{tpu_custom_call.1} parent=11 // pred_region
          _
        $region16: #{tpu_custom_call.1} parent=11 // pred_fallthru
          _
        // Predicated region
        $region17: #{tpu_custom_call.1} parent=11 // pred_check
          %p264 = pneg %p115
        $region18: #{tpu_custom_call.1} parent=11 // pred_check_branch
          %266 = sbr.rel (%p264) target = $region20
        $region19: #{tpu_custom_call.1} parent=11 // pred_region
          _
        $region20: #{tpu_custom_call.1} parent=11 // pred_fallthru
          _
        // Predicated region
        $region21: #{tpu_custom_call.1} parent=11 // pred_check
          %p267 = pneg %p136
        $region22: #{tpu_custom_call.1} parent=11 // pred_check_branch
          %269 = sbr.rel (%p267) target = $region24
        $region23: #{tpu_custom_call.1} parent=11 // pred_region
          _
        $region24: #{tpu_custom_call.1} parent=11 // pred_fallthru
          _
        // Predicated region
        $region25: #{tpu_custom_call.1} parent=11 // pred_check
          %p270 = pneg %p157
        $region26: #{tpu_custom_call.1} parent=11 // pred_check_branch
          %272 = sbr.rel (%p270) target = $region28
        $region27: #{tpu_custom_call.1} parent=11 // pred_region
          _
        $region28: #{tpu_custom_call.1} parent=11 // pred_fallthru
          _
        // Predicated region
        $region29: #{tpu_custom_call.1} parent=11 // pred_check
          %p273 = pneg %p178
        $region30: #{tpu_custom_call.1} parent=11 // pred_check_branch
          %275 = sbr.rel (%p273) target = $region32
        $region31: #{tpu_custom_call.1} parent=11 // pred_region
          _
        $region32: #{tpu_custom_call.1} parent=11 // pred_fallthru
          _
        // Predicated region
        $region33: #{tpu_custom_call.1} parent=11 // pred_check
          %p276 = pneg %p199
        $region34: #{tpu_custom_call.1} parent=11 // pred_check_branch
          %278 = sbr.rel (%p276) target = $region36
        $region35: #{tpu_custom_call.1} parent=11 // pred_region
          _
        $region36: #{tpu_custom_call.1} parent=11 // pred_fallthru
          _
        // Predicated region
        $region37: #{tpu_custom_call.1} parent=11 // pred_check
          %p279 = pneg %p220
        $region38: #{tpu_custom_call.1} parent=11 // pred_check_branch
          %281 = sbr.rel (%p279) target = $region40
        $region39: #{tpu_custom_call.1} parent=11 // pred_region
          _
        $region40: #{tpu_custom_call.1} parent=11 // pred_fallthru
          _
      $region12: #{tpu_custom_call.1} parent=5 // pred_fallthru
        _
      %p282 = scmp.lt.s32.totalorder %s21, 4
      // Predicated region
      $region41: #{tpu_custom_call.1} parent=5 // pred_check
        %p283 = pneg %p282
      $region42: #{tpu_custom_call.1} parent=5 // pred_check_branch
        %285 = sbr.rel (%p283) target = $region44
      $region43: #{tpu_custom_call.1} parent=5 // pred_region
        // Predicated region
        $region45: #{tpu_custom_call.1} parent=43 // pred_check
          %p286 = pneg %p41
        $region46: #{tpu_custom_call.1} parent=43 // pred_check_branch
          %288 = sbr.rel (%p286) target = $region48
        $region47: #{tpu_custom_call.1} parent=43 // pred_region
          %s289 = sand.u32 %s31, 1
          %s290 = scalar_lea.sflag [#allocation3], %s289
          %s291 = sand.u32 %s31, 1
          %s292 = smul.addr %s291, 128
          %s293 = scalar_lea.vmem [#allocation2], %s292
          %s294 = smul.u32 4, %s21
          %s296 = ssub.s32 2048, 2048
          %297 = vsyncadd %s290, %s296
          %s298 = smul.addr %s294, 128
          %s299 = scalar_lea.hbm %s0, %s298
          %s300 = sshll.u32 %s293, 4
          %s301 = int_to_ptr.vmem [resolvable:$true] %s300
          %306 = dma.hbm_to_vmem [thread:$0]  %s299, 2048, %s301, %s290, 2048, 512, 32
        $region48: #{tpu_custom_call.1} parent=43 // pred_fallthru
          _
        // Predicated region
        $region49: #{tpu_custom_call.1} parent=43 // pred_check
          %p307 = pneg %p67
        $region50: #{tpu_custom_call.1} parent=43 // pred_check_branch
          %309 = sbr.rel (%p307) target = $region52
        $region51: #{tpu_custom_call.1} parent=43 // pred_region
          %s310 = smul.u32 4, %s21
          %p311 = scmp.lt.s32.totalorder %s310, 15
          %s312 = scalar_select %p311, %s310, 15
          %s313 = scalar_lea.vmem %s1, %s312
          %s314 = smul.u32 4, %s21
        $region52: #{tpu_custom_call.1} parent=43 // pred_fallthru
          _
      $region44: #{tpu_custom_call.1} parent=5 // pred_fallthru
        _
      %p315 = scmp.le.s32.totalorder 1, %s21
      %p316 = scmp.lt.s32.totalorder %s21, 5
      %p317 = pnand %p315, %p316
      %p318 = pneg %p317
      // Predicated region
      $region53: #{tpu_custom_call.1} parent=5 // pred_check
        _
      $region54: #{tpu_custom_call.1} parent=5 // pred_check_branch
        %320 = sbr.rel (%p317) target = $region56
      $region55: #{tpu_custom_call.1} parent=5 // pred_region
        %s321 = ssub.s32 %s21, 1
        %s322 = sand.u32 %s34, 1
        %s323 = scalar_lea.sflag [#allocation3], %s322
        %s324 = sand.u32 %s34, 1
        %s325 = smul.addr %s324, 128
        %s326 = scalar_lea.vmem [#allocation2], %s325
        // Predicated region
        $region57: #{tpu_custom_call.1} parent=55 // pred_check
          %p327 = pneg %p47
        $region58: #{tpu_custom_call.1} parent=55 // pred_check_branch
          %329 = sbr.rel (%p327) target = $region60
        $region59: #{tpu_custom_call.1} parent=55 // pred_region
          %330 = dma.done %s323, 2048
        $region60: #{tpu_custom_call.1} parent=55 // pred_fallthru
          _
        %s331 = sand.u32 %s34, 1
        %s332 = scalar_lea.sflag [#allocation3], %s331
        %s333 = sand.u32 %s34, 1
        %s334 = smul.addr %s333, 128
        %s335 = scalar_lea.vmem [#allocation2], %s334
        %p336 = pneg %p47
        %p337 = pneg %p44
        %s338 = smul.u32 4, %s26
        %p339 = scmp.lt.s32.totalorder %s338, 15
        %s340 = scalar_select %p339, %s338, 15
        %s341 = scalar_lea.vmem %s1, %s340
        %p342 = pneg %p73
        %p343 = pneg %p70
        %p344 = pneg %p94
        %p345 = pneg %p91
        %p346 = pneg %p115
        %p347 = pneg %p112
        %p348 = pneg %p136
        %p349 = pneg %p133
        %p350 = pneg %p157
        %p351 = pneg %p154
        %p352 = pneg %p178
        %p353 = pneg %p175
        %p354 = pneg %p199
        %p355 = pneg %p196
        %p356 = pneg %p220
        %p357 = pneg %p217
        %p358 = pneg %p246
        %p359 = pneg %p243
        %s360 = sand.u32 %s233, 1
        %s361 = scalar_lea.sflag [#allocation4], %s360
        %s362 = sand.u32 %s233, 1
        %s363 = smul.addr %s362, 128
        %s364 = scalar_lea.vmem [#allocation5], %s363
        %s365 = smul.u32 4, %s26
        %s366 = smul.u32 4, %s26
        %p367 = scmp.lt.s32.totalorder %s366, 15
        %s368 = scalar_select %p367, %s366, 15
        %s369 = scalar_lea.vmem %s1, %s368
        %s370 = smul.u32 4, %s26
        %s371 = smul.u32 4, %s26
        %v372 = vld [vmem:[%s326] sm:$0xff]
        %v373 = vld [vmem:[%s326 + $0x8] sm:$0xff]
        %v374 = vld [vmem:[%s326 + $0x10] sm:$0xff]
        %v375 = vld [vmem:[%s326 + $0x18] sm:$0xff]
        %v376 = vld [vmem:[%s326 + $0x20] sm:$0xff]
        %v377 = vld [vmem:[%s326 + $0x28] sm:$0xff]
        %v378 = vld [vmem:[%s326 + $0x30] sm:$0xff]
        %v379 = vld [vmem:[%s326 + $0x38] sm:$0xff]
        %v380 = vld [vmem:[%s326 + $0x40] sm:$0xff]
        %v381 = vld [vmem:[%s326 + $0x48] sm:$0xff]
        %v382 = vld [vmem:[%s326 + $0x50] sm:$0xff]
        %v383 = vld [vmem:[%s326 + $0x58] sm:$0xff]
        %v384 = vld [vmem:[%s326 + $0x60] sm:$0xff]
        %v385 = vld [vmem:[%s326 + $0x68] sm:$0xff]
        %v386 = vld [vmem:[%s326 + $0x70] sm:$0xff]
        %v387 = vld [vmem:[%s326 + $0x78] sm:$0xff]
        %v388 = vld [vmem:[%s369] sm:$0xf]
        %v389 = vld [vmem:[%s2] sm:$0xff]
        %v390 = vld [vmem:[%s2 + $0x8] sm:$0xff]
        %v391 = vld [vmem:[%s2 + $0x10] sm:$0xff]
        %v392 = vld [vmem:[%s2 + $0x18] sm:$0xff]
        %v393 = vld [vmem:[%s2 + $0x20] sm:$0xff]
        %v394 = vld [vmem:[%s2 + $0x28] sm:$0xff]
        %v395 = vld [vmem:[%s2 + $0x30] sm:$0xff]
        %v396 = vld [vmem:[%s2 + $0x38] sm:$0xff]
        %v397 = vld [vmem:[%s2 + $0x40] sm:$0xff]
        %v398 = vld [vmem:[%s2 + $0x48] sm:$0xff]
        %v399 = vld [vmem:[%s2 + $0x50] sm:$0xff]
        %v400 = vld [vmem:[%s2 + $0x58] sm:$0xff]
        %v401 = vld [vmem:[%s2 + $0x60] sm:$0xff]
        %v402 = vld [vmem:[%s2 + $0x68] sm:$0xff]
        %v403 = vld [vmem:[%s2 + $0x70] sm:$0xff]
        %v404 = vld [vmem:[%s2 + $0x78] sm:$0xff]
        %v406 = vlaneseq
        %v407 = vshrl.u32 %v406, 7
        %v408 = vsub.s32 0, %v407
        %v409 = vrot.slane %v388, %v408
        %v410 = vlaneseq
        %v411 = vshrl.u32 %v410, 7
        %v412 = vsub.s32 1, %v411
        %v413 = vrot.slane %v388, %v412
        %v414 = vlaneseq
        %v415 = vshrl.u32 %v414, 7
        %v416 = vsub.s32 2, %v415
        %v417 = vrot.slane %v388, %v416
        %v418 = vlaneseq
        %v419 = vshrl.u32 %v418, 7
        %v420 = vsub.s32 3, %v419
        %v421 = vrot.slane %v388, %v420
        %427 = vset.pattern.permute.xlu0 1
        %428 = vperm.xlu0 %427, %v389
        %v429 = vpop.permute.xlu0 %428
        %432 = vset.pattern.permute.xlu0 1
        %433 = vperm.xlu0 %432, %v390
        %v434 = vpop.permute.xlu0 %433
        %437 = vset.pattern.permute.xlu0 1
        %438 = vperm.xlu0 %437, %v391
        %v439 = vpop.permute.xlu0 %438
        %442 = vset.pattern.permute.xlu0 1
        %443 = vperm.xlu0 %442, %v392
        %v444 = vpop.permute.xlu0 %443
        %447 = vset.pattern.permute.xlu0 1
        %448 = vperm.xlu0 %447, %v393
        %v449 = vpop.permute.xlu0 %448
        %452 = vset.pattern.permute.xlu0 1
        %453 = vperm.xlu0 %452, %v394
        %v454 = vpop.permute.xlu0 %453
        %457 = vset.pattern.permute.xlu0 1
        %458 = vperm.xlu0 %457, %v395
        %v459 = vpop.permute.xlu0 %458
        %462 = vset.pattern.permute.xlu0 1
        %463 = vperm.xlu0 %462, %v396
        %v464 = vpop.permute.xlu0 %463
        %467 = vset.pattern.permute.xlu0 1
        %468 = vperm.xlu0 %467, %v397
        %v469 = vpop.permute.xlu0 %468
        %472 = vset.pattern.permute.xlu0 1
        %473 = vperm.xlu0 %472, %v398
        %v474 = vpop.permute.xlu0 %473
        %477 = vset.pattern.permute.xlu0 1
        %478 = vperm.xlu0 %477, %v399
        %v479 = vpop.permute.xlu0 %478
        %482 = vset.pattern.permute.xlu0 1
        %483 = vperm.xlu0 %482, %v400
        %v484 = vpop.permute.xlu0 %483
        %487 = vset.pattern.permute.xlu0 1
        %488 = vperm.xlu0 %487, %v401
        %v489 = vpop.permute.xlu0 %488
        %492 = vset.pattern.permute.xlu0 1
        %493 = vperm.xlu0 %492, %v402
        %v494 = vpop.permute.xlu0 %493
        %497 = vset.pattern.permute.xlu0 1
        %498 = vperm.xlu0 %497, %v403
        %v499 = vpop.permute.xlu0 %498
        %502 = vset.pattern.permute.xlu0 1
        %503 = vperm.xlu0 %502, %v404
        %v504 = vpop.permute.xlu0 %503
        %v506 = vmul.f32 %v409, %v429
        %v507 = vmul.f32 %v413, %v429
        %v508 = vmul.f32 %v417, %v429
        %v509 = vmul.f32 %v421, %v429
        %v510 = vmul.f32 %v409, %v434
        %v511 = vmul.f32 %v413, %v434
        %v512 = vmul.f32 %v417, %v434
        %v513 = vmul.f32 %v421, %v434
        %v514 = vmul.f32 %v409, %v439
        %v515 = vmul.f32 %v413, %v439
        %v516 = vmul.f32 %v417, %v439
        %v517 = vmul.f32 %v421, %v439
        %v518 = vmul.f32 %v409, %v444
        %v519 = vmul.f32 %v413, %v444
        %v520 = vmul.f32 %v417, %v444
        %v521 = vmul.f32 %v421, %v444
        %v522 = vmul.f32 %v409, %v449
        %v523 = vmul.f32 %v413, %v449
        %v524 = vmul.f32 %v417, %v449
        %v525 = vmul.f32 %v421, %v449
        %v526 = vmul.f32 %v409, %v454
        %v527 = vmul.f32 %v413, %v454
        %v528 = vmul.f32 %v417, %v454
        %v529 = vmul.f32 %v421, %v454
        %v530 = vmul.f32 %v409, %v459
        %v531 = vmul.f32 %v413, %v459
        %v532 = vmul.f32 %v417, %v459
        %v533 = vmul.f32 %v421, %v459
        %v534 = vmul.f32 %v409, %v464
        %v535 = vmul.f32 %v413, %v464
        %v536 = vmul.f32 %v417, %v464
        %v537 = vmul.f32 %v421, %v464
        %v538 = vmul.f32 %v409, %v469
        %v539 = vmul.f32 %v413, %v469
        %v540 = vmul.f32 %v417, %v469
        %v541 = vmul.f32 %v421, %v469
        %v542 = vmul.f32 %v409, %v474
        %v543 = vmul.f32 %v413, %v474
        %v544 = vmul.f32 %v417, %v474
        %v545 = vmul.f32 %v421, %v474
        %v546 = vmul.f32 %v409, %v479
        %v547 = vmul.f32 %v413, %v479
        %v548 = vmul.f32 %v417, %v479
        %v549 = vmul.f32 %v421, %v479
        %v550 = vmul.f32 %v409, %v484
        %v551 = vmul.f32 %v413, %v484
        %v552 = vmul.f32 %v417, %v484
        %v553 = vmul.f32 %v421, %v484
        %v554 = vmul.f32 %v409, %v489
        %v555 = vmul.f32 %v413, %v489
        %v556 = vmul.f32 %v417, %v489
        %v557 = vmul.f32 %v421, %v489
        %v558 = vmul.f32 %v409, %v494
        %v559 = vmul.f32 %v413, %v494
        %v560 = vmul.f32 %v417, %v494
        %v561 = vmul.f32 %v421, %v494
        %v562 = vmul.f32 %v409, %v499
        %v563 = vmul.f32 %v413, %v499
        %v564 = vmul.f32 %v417, %v499
        %v565 = vmul.f32 %v421, %v499
        %v566 = vmul.f32 %v409, %v504
        %v567 = vmul.f32 %v413, %v504
        %v568 = vmul.f32 %v417, %v504
        %v569 = vmul.f32 %v421, %v504
        %570 = vset.pattern.permute.xlu0 0
        %571 = vperm.xlu0 %570, %v389
        %v572 = vpop.permute.xlu0 %571
        %574 = vset.pattern.permute.xlu0 0
        %575 = vperm.xlu0 %574, %v390
        %v576 = vpop.permute.xlu0 %575
        %578 = vset.pattern.permute.xlu0 0
        %579 = vperm.xlu0 %578, %v391
        %v580 = vpop.permute.xlu0 %579
        %582 = vset.pattern.permute.xlu0 0
        %583 = vperm.xlu0 %582, %v392
        %v584 = vpop.permute.xlu0 %583
        %586 = vset.pattern.permute.xlu0 0
        %587 = vperm.xlu0 %586, %v393
        %v588 = vpop.permute.xlu0 %587
        %590 = vset.pattern.permute.xlu0 0
        %591 = vperm.xlu0 %590, %v394
        %v592 = vpop.permute.xlu0 %591
        %594 = vset.pattern.permute.xlu0 0
        %595 = vperm.xlu0 %594, %v395
        %v596 = vpop.permute.xlu0 %595
        %598 = vset.pattern.permute.xlu0 0
        %599 = vperm.xlu0 %598, %v396
        %v600 = vpop.permute.xlu0 %599
        %602 = vset.pattern.permute.xlu0 0
        %603 = vperm.xlu0 %602, %v397
        %v604 = vpop.permute.xlu0 %603
        %606 = vset.pattern.permute.xlu0 0
        %607 = vperm.xlu0 %606, %v398
        %v608 = vpop.permute.xlu0 %607
        %610 = vset.pattern.permute.xlu0 0
        %611 = vperm.xlu0 %610, %v399
        %v612 = vpop.permute.xlu0 %611
        %614 = vset.pattern.permute.xlu0 0
        %615 = vperm.xlu0 %614, %v400
        %v616 = vpop.permute.xlu0 %615
        %618 = vset.pattern.permute.xlu0 0
        %619 = vperm.xlu0 %618, %v401
        %v620 = vpop.permute.xlu0 %619
        %622 = vset.pattern.permute.xlu0 0
        %623 = vperm.xlu0 %622, %v402
        %v624 = vpop.permute.xlu0 %623
        %626 = vset.pattern.permute.xlu0 0
        %627 = vperm.xlu0 %626, %v403
        %v628 = vpop.permute.xlu0 %627
        %630 = vset.pattern.permute.xlu0 0
        %631 = vperm.xlu0 %630, %v404
        %v632 = vpop.permute.xlu0 %631
        %v634 = vadd.f32 %v572, %v506
        %v635 = vadd.f32 %v572, %v507
        %v636 = vadd.f32 %v572, %v508
        %v637 = vadd.f32 %v572, %v509
        %v638 = vadd.f32 %v576, %v510
        %v639 = vadd.f32 %v576, %v511
        %v640 = vadd.f32 %v576, %v512
        %v641 = vadd.f32 %v576, %v513
        %v642 = vadd.f32 %v580, %v514
        %v643 = vadd.f32 %v580, %v515
        %v644 = vadd.f32 %v580, %v516
        %v645 = vadd.f32 %v580, %v517
        %v646 = vadd.f32 %v584, %v518
        %v647 = vadd.f32 %v584, %v519
        %v648 = vadd.f32 %v584, %v520
        %v649 = vadd.f32 %v584, %v521
        %v650 = vadd.f32 %v588, %v522
        %v651 = vadd.f32 %v588, %v523
        %v652 = vadd.f32 %v588, %v524
        %v653 = vadd.f32 %v588, %v525
        %v654 = vadd.f32 %v592, %v526
        %v655 = vadd.f32 %v592, %v527
        %v656 = vadd.f32 %v592, %v528
        %v657 = vadd.f32 %v592, %v529
        %v658 = vadd.f32 %v596, %v530
        %v659 = vadd.f32 %v596, %v531
        %v660 = vadd.f32 %v596, %v532
        %v661 = vadd.f32 %v596, %v533
        %v662 = vadd.f32 %v600, %v534
        %v663 = vadd.f32 %v600, %v535
        %v664 = vadd.f32 %v600, %v536
        %v665 = vadd.f32 %v600, %v537
        %v666 = vadd.f32 %v604, %v538
        %v667 = vadd.f32 %v604, %v539
        %v668 = vadd.f32 %v604, %v540
        %v669 = vadd.f32 %v604, %v541
        %v670 = vadd.f32 %v608, %v542
        %v671 = vadd.f32 %v608, %v543
        %v672 = vadd.f32 %v608, %v544
        %v673 = vadd.f32 %v608, %v545
        %v674 = vadd.f32 %v612, %v546
        %v675 = vadd.f32 %v612, %v547
        %v676 = vadd.f32 %v612, %v548
        %v677 = vadd.f32 %v612, %v549
        %v678 = vadd.f32 %v616, %v550
        %v679 = vadd.f32 %v616, %v551
        %v680 = vadd.f32 %v616, %v552
        %v681 = vadd.f32 %v616, %v553
        %v682 = vadd.f32 %v620, %v554
        %v683 = vadd.f32 %v620, %v555
        %v684 = vadd.f32 %v620, %v556
        %v685 = vadd.f32 %v620, %v557
        %v686 = vadd.f32 %v624, %v558
        %v687 = vadd.f32 %v624, %v559
        %v688 = vadd.f32 %v624, %v560
        %v689 = vadd.f32 %v624, %v561
        %v690 = vadd.f32 %v628, %v562
        %v691 = vadd.f32 %v628, %v563
        %v692 = vadd.f32 %v628, %v564
        %v693 = vadd.f32 %v628, %v565
        %v694 = vadd.f32 %v632, %v566
        %v695 = vadd.f32 %v632, %v567
        %v696 = vadd.f32 %v632, %v568
        %v697 = vadd.f32 %v632, %v569
        %v698 = vmul.f32 %v372, %v634
        %v699 = vmul.f32 %v373, %v635
        %v700 = vmul.f32 %v374, %v636
        %v701 = vmul.f32 %v375, %v637
        %v702 = vmul.f32 %v376, %v638
        %v703 = vmul.f32 %v377, %v639
        %v704 = vmul.f32 %v378, %v640
        %v705 = vmul.f32 %v379, %v641
        %v706 = vmul.f32 %v380, %v642
        %v707 = vmul.f32 %v381, %v643
        %v708 = vmul.f32 %v382, %v644
        %v709 = vmul.f32 %v383, %v645
        %v710 = vmul.f32 %v384, %v646
        %v711 = vmul.f32 %v385, %v647
        %v712 = vmul.f32 %v386, %v648
        %v713 = vmul.f32 %v387, %v649
        %v714 = vmul.f32 %v372, %v650
        %v715 = vmul.f32 %v373, %v651
        %v716 = vmul.f32 %v374, %v652
        %v717 = vmul.f32 %v375, %v653
        %v718 = vmul.f32 %v376, %v654
        %v719 = vmul.f32 %v377, %v655
        %v720 = vmul.f32 %v378, %v656
        %v721 = vmul.f32 %v379, %v657
        %v722 = vmul.f32 %v380, %v658
        %v723 = vmul.f32 %v381, %v659
        %v724 = vmul.f32 %v382, %v660
        %v725 = vmul.f32 %v383, %v661
        %v726 = vmul.f32 %v384, %v662
        %v727 = vmul.f32 %v385, %v663
        %v728 = vmul.f32 %v386, %v664
        %v729 = vmul.f32 %v387, %v665
        %v730 = vmul.f32 %v372, %v666
        %v731 = vmul.f32 %v373, %v667
        %v732 = vmul.f32 %v374, %v668
        %v733 = vmul.f32 %v375, %v669
        %v734 = vmul.f32 %v376, %v670
        %v735 = vmul.f32 %v377, %v671
        %v736 = vmul.f32 %v378, %v672
        %v737 = vmul.f32 %v379, %v673
        %v738 = vmul.f32 %v380, %v674
        %v739 = vmul.f32 %v381, %v675
        %v740 = vmul.f32 %v382, %v676
        %v741 = vmul.f32 %v383, %v677
        %v742 = vmul.f32 %v384, %v678
        %v743 = vmul.f32 %v385, %v679
        %v744 = vmul.f32 %v386, %v680
        %v745 = vmul.f32 %v387, %v681
        %v746 = vmul.f32 %v372, %v682
        %v747 = vmul.f32 %v373, %v683
        %v748 = vmul.f32 %v374, %v684
        %v749 = vmul.f32 %v375, %v685
        %v750 = vmul.f32 %v376, %v686
        %v751 = vmul.f32 %v377, %v687
        %v752 = vmul.f32 %v378, %v688
        %v753 = vmul.f32 %v379, %v689
        %v754 = vmul.f32 %v380, %v690
        %v755 = vmul.f32 %v381, %v691
        %v756 = vmul.f32 %v382, %v692
        %v757 = vmul.f32 %v383, %v693
        %v758 = vmul.f32 %v384, %v694
        %v759 = vmul.f32 %v385, %v695
        %v760 = vmul.f32 %v386, %v696
        %v761 = vmul.f32 %v387, %v697
        %v762 = vld [vmem:[%s3] sm:$0xff]
        %v763 = vld [vmem:[%s3 + $0x8] sm:$0xff]
        %v764 = vld [vmem:[%s3 + $0x10] sm:$0xff]
        %v765 = vld [vmem:[%s3 + $0x18] sm:$0xff]
        %v766 = vld [vmem:[%s3 + $0x20] sm:$0xff]
        %v767 = vld [vmem:[%s3 + $0x28] sm:$0xff]
        %v768 = vld [vmem:[%s3 + $0x30] sm:$0xff]
        %v769 = vld [vmem:[%s3 + $0x38] sm:$0xff]
        %v770 = vld [vmem:[%s3 + $0x40] sm:$0xff]
        %v771 = vld [vmem:[%s3 + $0x48] sm:$0xff]
        %v772 = vld [vmem:[%s3 + $0x50] sm:$0xff]
        %v773 = vld [vmem:[%s3 + $0x58] sm:$0xff]
        %v774 = vld [vmem:[%s3 + $0x60] sm:$0xff]
        %v775 = vld [vmem:[%s3 + $0x68] sm:$0xff]
        %v776 = vld [vmem:[%s3 + $0x70] sm:$0xff]
        %v777 = vld [vmem:[%s3 + $0x78] sm:$0xff]
        %v778 = vld [vmem:[%s4] sm:$0xff]
        %v779 = vld [vmem:[%s4 + $0x8] sm:$0xff]
        %v780 = vld [vmem:[%s4 + $0x10] sm:$0xff]
        %v781 = vld [vmem:[%s4 + $0x18] sm:$0xff]
        %v782 = vld [vmem:[%s4 + $0x20] sm:$0xff]
        %v783 = vld [vmem:[%s4 + $0x28] sm:$0xff]
        %v784 = vld [vmem:[%s4 + $0x30] sm:$0xff]
        %v785 = vld [vmem:[%s4 + $0x38] sm:$0xff]
        %v786 = vld [vmem:[%s4 + $0x40] sm:$0xff]
        %v787 = vld [vmem:[%s4 + $0x48] sm:$0xff]
        %v788 = vld [vmem:[%s4 + $0x50] sm:$0xff]
        %v789 = vld [vmem:[%s4 + $0x58] sm:$0xff]
        %v790 = vld [vmem:[%s4 + $0x60] sm:$0xff]
        %v791 = vld [vmem:[%s4 + $0x68] sm:$0xff]
        %v792 = vld [vmem:[%s4 + $0x70] sm:$0xff]
        %v793 = vld [vmem:[%s4 + $0x78] sm:$0xff]
        %795 = vset.pattern.permute.xlu0 0
        %796 = vperm.xlu0 %795, %v778
        %v797 = vpop.permute.xlu0 %796
        %800 = vset.pattern.permute.xlu0 0
        %801 = vperm.xlu0 %800, %v779
        %v802 = vpop.permute.xlu0 %801
        %805 = vset.pattern.permute.xlu0 0
        %806 = vperm.xlu0 %805, %v780
        %v807 = vpop.permute.xlu0 %806
        %810 = vset.pattern.permute.xlu0 0
        %811 = vperm.xlu0 %810, %v781
        %v812 = vpop.permute.xlu0 %811
        %815 = vset.pattern.permute.xlu0 0
        %816 = vperm.xlu0 %815, %v782
        %v817 = vpop.permute.xlu0 %816
        %820 = vset.pattern.permute.xlu0 0
        %821 = vperm.xlu0 %820, %v783
        %v822 = vpop.permute.xlu0 %821
        %825 = vset.pattern.permute.xlu0 0
        %826 = vperm.xlu0 %825, %v784
        %v827 = vpop.permute.xlu0 %826
        %830 = vset.pattern.permute.xlu0 0
        %831 = vperm.xlu0 %830, %v785
        %v832 = vpop.permute.xlu0 %831
        %835 = vset.pattern.permute.xlu0 0
        %836 = vperm.xlu0 %835, %v786
        %v837 = vpop.permute.xlu0 %836
        %840 = vset.pattern.permute.xlu0 0
        %841 = vperm.xlu0 %840, %v787
        %v842 = vpop.permute.xlu0 %841
        %845 = vset.pattern.permute.xlu0 0
        %846 = vperm.xlu0 %845, %v788
        %v847 = vpop.permute.xlu0 %846
        %850 = vset.pattern.permute.xlu0 0
        %851 = vperm.xlu0 %850, %v789
        %v852 = vpop.permute.xlu0 %851
        %855 = vset.pattern.permute.xlu0 0
        %856 = vperm.xlu0 %855, %v790
        %v857 = vpop.permute.xlu0 %856
        %860 = vset.pattern.permute.xlu0 0
        %861 = vperm.xlu0 %860, %v791
        %v862 = vpop.permute.xlu0 %861
        %865 = vset.pattern.permute.xlu0 0
        %866 = vperm.xlu0 %865, %v792
        %v867 = vpop.permute.xlu0 %866
        %870 = vset.pattern.permute.xlu0 0
        %871 = vperm.xlu0 %870, %v793
        %v872 = vpop.permute.xlu0 %871
        %874 = vmatprep.subr.mxu0 %v699
        %875 = vmatpush1.msra.mxu0 %v698
        %876 = vmatprep.subr.mxu0 %v703
        %877 = vmatpush1.msra.mxu0 %v702
        %878 = vmatprep.subr.mxu0 %v707
        %879 = vmatpush1.msra.mxu0 %v706
        %880 = vmatprep.subr.mxu0 %v711
        %881 = vmatpush1.msra.mxu0 %v710
        %882 = vmatprep.subr.mxu0 %v715
        %883 = vmatpush1.msra.mxu0 %v714
        %884 = vmatprep.subr.mxu0 %v719
        %885 = vmatpush1.msra.mxu0 %v718
        %886 = vmatprep.subr.mxu0 %v723
        %887 = vmatpush1.msra.mxu0 %v722
        %888 = vmatprep.subr.mxu0 %v727
        %889 = vmatpush1.msra.mxu0 %v726
        %890 = vmatprep.subr.mxu0 %v731
        %891 = vmatpush1.msra.mxu0 %v730
        %892 = vmatprep.subr.mxu0 %v735
        %893 = vmatpush1.msra.mxu0 %v734
        %894 = vmatprep.subr.mxu0 %v739
        %895 = vmatpush1.msra.mxu0 %v738
        %896 = vmatprep.subr.mxu0 %v743
        %897 = vmatpush1.msra.mxu0 %v742
        %898 = vmatprep.subr.mxu0 %v747
        %899 = vmatpush1.msra.mxu0 %v746
        %900 = vmatprep.subr.mxu0 %v751
        %901 = vmatpush1.msra.mxu0 %v750
        %902 = vmatprep.subr.mxu0 %v755
        %903 = vmatpush1.msra.mxu0 %v754
        %904 = vmatprep.subr.mxu0 %v759
        %905 = vmatpush1.msra.mxu0 %v758
        %906 = vmatprep.subr.mxu0 0.0
        %907 = vmatpush1.msra.mxu0 0.0
        %908 = vmatprep.subr.mxu0 0.0
        %909 = vmatpush1.msra.mxu0 0.0
        %910 = vmatprep.subr.mxu0 0.0
        %911 = vmatpush1.msra.mxu0 0.0
        %912 = vmatprep.subr.mxu0 0.0
        %913 = vmatpush1.msra.mxu0 0.0
        %914 = vmatprep.subr.mxu0 0.0
        %915 = vmatpush1.msra.mxu0 0.0
        %916 = vmatprep.subr.mxu0 0.0
        %917 = vmatpush1.msra.mxu0 0.0
        %918 = vmatprep.subr.mxu0 0.0
        %919 = vmatpush1.msra.mxu0 0.0
        %920 = vmatprep.subr.mxu0 0.0
        %921 = vmatpush1.msra.mxu0 0.0
        %922 = vmatprep.subr.mxu0 0.0
        %923 = vmatpush1.msra.mxu0 0.0
        %924 = vmatprep.subr.mxu0 0.0
        %925 = vmatpush1.msra.mxu0 0.0
        %926 = vmatprep.subr.mxu0 0.0
        %927 = vmatpush1.msra.mxu0 0.0
        %928 = vmatprep.subr.mxu0 0.0
        %929 = vmatpush1.msra.mxu0 0.0
        %930 = vmatprep.subr.mxu0 0.0
        %931 = vmatpush1.msra.mxu0 0.0
        %932 = vmatprep.subr.mxu0 0.0
        %933 = vmatpush1.msra.mxu0 0.0
        %934 = vmatprep.subr.mxu0 0.0
        %935 = vmatpush1.msra.mxu0 0.0
        %936 = vmatprep.subr.mxu0 0.0
        %937 = vmatpush1.msra.mxu0 0.0
        %938 = vmatprep.mubr.f32.mxu0 0.0
        %939 = vmatmul.mubr.f32.gmra.mrb[0].mxu0 %v762
        %v940 = vpop.f32.mrb[0].mxu0
        %v941 = vadd.f32 %v797, %v940
        %v942 = vpop.f32.mrb[0].mxu0
        %v943 = vadd.f32 %v797, %v942
        %944 = vmatprep.mubr.f32.mxu0 0.0
        %945 = vmatmul.mubr.f32.gmra.mrb[0].mxu0 %v763
        %v946 = vpop.f32.mrb[0].mxu0
        %v947 = vadd.f32 %v802, %v946
        %v948 = vpop.f32.mrb[0].mxu0
        %v949 = vadd.f32 %v802, %v948
        %950 = vmatprep.mubr.f32.mxu0 0.0
        %951 = vmatmul.mubr.f32.gmra.mrb[0].mxu0 %v764
        %v952 = vpop.f32.mrb[0].mxu0
        %v953 = vadd.f32 %v807, %v952
        %v954 = vpop.f32.mrb[0].mxu0
        %v955 = vadd.f32 %v807, %v954
        %956 = vmatprep.mubr.f32.mxu0 0.0
        %957 = vmatmul.mubr.f32.gmra.mrb[0].mxu0 %v765
        %v958 = vpop.f32.mrb[0].mxu0
        %v959 = vadd.f32 %v812, %v958
        %v960 = vpop.f32.mrb[0].mxu0
        %v961 = vadd.f32 %v812, %v960
        %962 = vmatprep.mubr.f32.mxu0 0.0
        %963 = vmatmul.mubr.f32.gmra.mrb[0].mxu0 %v766
        %v964 = vpop.f32.mrb[0].mxu0
        %v965 = vadd.f32 %v817, %v964
        %v966 = vpop.f32.mrb[0].mxu0
        %v967 = vadd.f32 %v817, %v966
        %968 = vmatprep.mubr.f32.mxu0 0.0
        %969 = vmatmul.mubr.f32.gmra.mrb[0].mxu0 %v767
        %v970 = vpop.f32.mrb[0].mxu0
        %v971 = vadd.f32 %v822, %v970
        %v972 = vpop.f32.mrb[0].mxu0
        %v973 = vadd.f32 %v822, %v972
        %974 = vmatprep.mubr.f32.mxu0 0.0
        %975 = vmatmul.mubr.f32.gmra.mrb[0].mxu0 %v768
        %v976 = vpop.f32.mrb[0].mxu0
        %v977 = vadd.f32 %v827, %v976
        %v978 = vpop.f32.mrb[0].mxu0
        %v979 = vadd.f32 %v827, %v978
        %980 = vmatprep.mubr.f32.mxu0 0.0
        %981 = vmatmul.mubr.f32.gmra.mrb[0].mxu0 %v769
        %v982 = vpop.f32.mrb[0].mxu0
        %v983 = vadd.f32 %v832, %v982
        %v984 = vpop.f32.mrb[0].mxu0
        %v985 = vadd.f32 %v832, %v984
        %986 = vmatprep.mubr.f32.mxu0 0.0
        %987 = vmatmul.mubr.f32.gmra.mrb[0].mxu0 %v770
        %v988 = vpop.f32.mrb[0].mxu0
        %v989 = vadd.f32 %v837, %v988
        %v990 = vpop.f32.mrb[0].mxu0
        %v991 = vadd.f32 %v837, %v990
        %992 = vmatprep.mubr.f32.mxu0 0.0
        %993 = vmatmul.mubr.f32.gmra.mrb[0].mxu0 %v771
        %v994 = vpop.f32.mrb[0].mxu0
        %v995 = vadd.f32 %v842, %v994
        %v996 = vpop.f32.mrb[0].mxu0
        %v997 = vadd.f32 %v842, %v996
        %998 = vmatprep.mubr.f32.mxu0 0.0
        %999 = vmatmul.mubr.f32.gmra.mrb[0].mxu0 %v772
        %v1000 = vpop.f32.mrb[0].mxu0
        %v1001 = vadd.f32 %v847, %v1000
        %v1002 = vpop.f32.mrb[0].mxu0
        %v1003 = vadd.f32 %v847, %v1002
        %1004 = vmatprep.mubr.f32.mxu0 0.0
        %1005 = vmatmul.mubr.f32.gmra.mrb[0].mxu0 %v773
        %v1006 = vpop.f32.mrb[0].mxu0
        %v1007 = vadd.f32 %v852, %v1006
        %v1008 = vpop.f32.mrb[0].mxu0
        %v1009 = vadd.f32 %v852, %v1008
        %1010 = vmatprep.mubr.f32.mxu0 0.0
        %1011 = vmatmul.mubr.f32.gmra.mrb[0].mxu0 %v774
        %v1012 = vpop.f32.mrb[0].mxu0
        %v1013 = vadd.f32 %v857, %v1012
        %v1014 = vpop.f32.mrb[0].mxu0
        %v1015 = vadd.f32 %v857, %v1014
        %1016 = vmatprep.mubr.f32.mxu0 0.0
        %1017 = vmatmul.mubr.f32.gmra.mrb[0].mxu0 %v775
        %v1018 = vpop.f32.mrb[0].mxu0
        %v1019 = vadd.f32 %v862, %v1018
        %v1020 = vpop.f32.mrb[0].mxu0
        %v1021 = vadd.f32 %v862, %v1020
        %1022 = vmatprep.mubr.f32.mxu0 0.0
        %1023 = vmatmul.mubr.f32.gmra.mrb[0].mxu0 %v776
        %v1024 = vpop.f32.mrb[0].mxu0
        %v1025 = vadd.f32 %v867, %v1024
        %v1026 = vpop.f32.mrb[0].mxu0
        %v1027 = vadd.f32 %v867, %v1026
        %1028 = vmatprep.mubr.f32.mxu0 0.0
        %1029 = vmatmul.mubr.f32.gmra.mrb[0].mxu0 %v777
        %v1030 = vpop.f32.mrb[0].mxu0
        %v1031 = vadd.f32 %v872, %v1030
        %v1032 = vpop.f32.mrb[0].mxu0
        %v1033 = vadd.f32 %v872, %v1032
        %1034 = vdwg.mxu0
        %1035 = vmatprep.subr.mxu0 %v701
        %1036 = vmatpush1.msra.mxu0 %v700
        %1037 = vmatprep.subr.mxu0 %v705
        %1038 = vmatpush1.msra.mxu0 %v704
        %1039 = vmatprep.subr.mxu0 %v709
        %1040 = vmatpush1.msra.mxu0 %v708
        %1041 = vmatprep.subr.mxu0 %v713
        %1042 = vmatpush1.msra.mxu0 %v712
        %1043 = vmatprep.subr.mxu0 %v717
        %1044 = vmatpush1.msra.mxu0 %v716
        %1045 = vmatprep.subr.mxu0 %v721
        %1046 = vmatpush1.msra.mxu0 %v720
        %1047 = vmatprep.subr.mxu0 %v725
        %1048 = vmatpush1.msra.mxu0 %v724
        %1049 = vmatprep.subr.mxu0 %v729
        %1050 = vmatpush1.msra.mxu0 %v728
        %1051 = vmatprep.subr.mxu0 %v733
        %1052 = vmatpush1.msra.mxu0 %v732
        %1053 = vmatprep.subr.mxu0 %v737
        %1054 = vmatpush1.msra.mxu0 %v736
        %1055 = vmatprep.subr.mxu0 %v741
        %1056 = vmatpush1.msra.mxu0 %v740
        %1057 = vmatprep.subr.mxu0 %v745
        %1058 = vmatpush1.msra.mxu0 %v744
        %1059 = vmatprep.subr.mxu0 %v749
        %1060 = vmatpush1.msra.mxu0 %v748
        %1061 = vmatprep.subr.mxu0 %v753
        %1062 = vmatpush1.msra.mxu0 %v752
        %1063 = vmatprep.subr.mxu0 %v757
        %1064 = vmatpush1.msra.mxu0 %v756
        %1065 = vmatprep.subr.mxu0 %v761
        %1066 = vmatpush1.msra.mxu0 %v760
        %1067 = vmatprep.subr.mxu0 0.0
        %1068 = vmatpush1.msra.mxu0 0.0
        %1069 = vmatprep.subr.mxu0 0.0
        %1070 = vmatpush1.msra.mxu0 0.0
        %1071 = vmatprep.subr.mxu0 0.0
        %1072 = vmatpush1.msra.mxu0 0.0
        %1073 = vmatprep.subr.mxu0 0.0
        %1074 = vmatpush1.msra.mxu0 0.0
        %1075 = vmatprep.subr.mxu0 0.0
        %1076 = vmatpush1.msra.mxu0 0.0
        %1077 = vmatprep.subr.mxu0 0.0
        %1078 = vmatpush1.msra.mxu0 0.0
        %1079 = vmatprep.subr.mxu0 0.0
        %1080 = vmatpush1.msra.mxu0 0.0
        %1081 = vmatprep.subr.mxu0 0.0
        %1082 = vmatpush1.msra.mxu0 0.0
        %1083 = vmatprep.subr.mxu0 0.0
        %1084 = vmatpush1.msra.mxu0 0.0
        %1085 = vmatprep.subr.mxu0 0.0
        %1086 = vmatpush1.msra.mxu0 0.0
        %1087 = vmatprep.subr.mxu0 0.0
        %1088 = vmatpush1.msra.mxu0 0.0
        %1089 = vmatprep.subr.mxu0 0.0
        %1090 = vmatpush1.msra.mxu0 0.0
        %1091 = vmatprep.subr.mxu0 0.0
        %1092 = vmatpush1.msra.mxu0 0.0
        %1093 = vmatprep.subr.mxu0 0.0
        %1094 = vmatpush1.msra.mxu0 0.0
        %1095 = vmatprep.subr.mxu0 0.0
        %1096 = vmatpush1.msra.mxu0 0.0
        %1097 = vmatprep.subr.mxu0 0.0
        %1098 = vmatpush1.msra.mxu0 0.0
        %1099 = vmatprep.mubr.f32.mxu0 0.0
        %1100 = vmatmul.mubr.f32.gmra.mrb[0].mxu0 %v762
        %v1101 = vpop.f32.mrb[0].mxu0
        %v1102 = vadd.f32 %v797, %v1101
        %v1103 = vpop.f32.mrb[0].mxu0
        %v1104 = vadd.f32 %v797, %v1103
        %1105 = vmatprep.mubr.f32.mxu0 0.0
        %1106 = vmatmul.mubr.f32.gmra.mrb[0].mxu0 %v763
        %v1107 = vpop.f32.mrb[0].mxu0
        %v1108 = vadd.f32 %v802, %v1107
        %v1109 = vpop.f32.mrb[0].mxu0
        %v1110 = vadd.f32 %v802, %v1109
        %1111 = vmatprep.mubr.f32.mxu0 0.0
        %1112 = vmatmul.mubr.f32.gmra.mrb[0].mxu0 %v764
        %v1113 = vpop.f32.mrb[0].mxu0
        %v1114 = vadd.f32 %v807, %v1113
        %v1115 = vpop.f32.mrb[0].mxu0
        %v1116 = vadd.f32 %v807, %v1115
        %1117 = vmatprep.mubr.f32.mxu0 0.0
        %1118 = vmatmul.mubr.f32.gmra.mrb[0].mxu0 %v765
        %v1119 = vpop.f32.mrb[0].mxu0
        %v1120 = vadd.f32 %v812, %v1119
        %v1121 = vpop.f32.mrb[0].mxu0
        %v1122 = vadd.f32 %v812, %v1121
        %1123 = vmatprep.mubr.f32.mxu0 0.0
        %1124 = vmatmul.mubr.f32.gmra.mrb[0].mxu0 %v766
        %v1125 = vpop.f32.mrb[0].mxu0
        %v1126 = vadd.f32 %v817, %v1125
        %v1127 = vpop.f32.mrb[0].mxu0
        %v1128 = vadd.f32 %v817, %v1127
        %1129 = vmatprep.mubr.f32.mxu0 0.0
        %1130 = vmatmul.mubr.f32.gmra.mrb[0].mxu0 %v767
        %v1131 = vpop.f32.mrb[0].mxu0
        %v1132 = vadd.f32 %v822, %v1131
        %v1133 = vpop.f32.mrb[0].mxu0
        %v1134 = vadd.f32 %v822, %v1133
        %1135 = vmatprep.mubr.f32.mxu0 0.0
        %1136 = vmatmul.mubr.f32.gmra.mrb[0].mxu0 %v768
        %v1137 = vpop.f32.mrb[0].mxu0
        %v1138 = vadd.f32 %v827, %v1137
        %v1139 = vpop.f32.mrb[0].mxu0
        %v1140 = vadd.f32 %v827, %v1139
        %1141 = vmatprep.mubr.f32.mxu0 0.0
        %1142 = vmatmul.mubr.f32.gmra.mrb[0].mxu0 %v769
        %v1143 = vpop.f32.mrb[0].mxu0
        %v1144 = vadd.f32 %v832, %v1143
        %v1145 = vpop.f32.mrb[0].mxu0
        %v1146 = vadd.f32 %v832, %v1145
        %1147 = vmatprep.mubr.f32.mxu0 0.0
        %1148 = vmatmul.mubr.f32.gmra.mrb[0].mxu0 %v770
        %v1149 = vpop.f32.mrb[0].mxu0
        %v1150 = vadd.f32 %v837, %v1149
        %v1151 = vpop.f32.mrb[0].mxu0
        %v1152 = vadd.f32 %v837, %v1151
        %1153 = vmatprep.mubr.f32.mxu0 0.0
        %1154 = vmatmul.mubr.f32.gmra.mrb[0].mxu0 %v771
        %v1155 = vpop.f32.mrb[0].mxu0
        %v1156 = vadd.f32 %v842, %v1155
        %v1157 = vpop.f32.mrb[0].mxu0
        %v1158 = vadd.f32 %v842, %v1157
        %1159 = vmatprep.mubr.f32.mxu0 0.0
        %1160 = vmatmul.mubr.f32.gmra.mrb[0].mxu0 %v772
        %v1161 = vpop.f32.mrb[0].mxu0
        %v1162 = vadd.f32 %v847, %v1161
        %v1163 = vpop.f32.mrb[0].mxu0
        %v1164 = vadd.f32 %v847, %v1163
        %1165 = vmatprep.mubr.f32.mxu0 0.0
        %1166 = vmatmul.mubr.f32.gmra.mrb[0].mxu0 %v773
        %v1167 = vpop.f32.mrb[0].mxu0
        %v1168 = vadd.f32 %v852, %v1167
        %v1169 = vpop.f32.mrb[0].mxu0
        %v1170 = vadd.f32 %v852, %v1169
        %1171 = vmatprep.mubr.f32.mxu0 0.0
        %1172 = vmatmul.mubr.f32.gmra.mrb[0].mxu0 %v774
        %v1173 = vpop.f32.mrb[0].mxu0
        %v1174 = vadd.f32 %v857, %v1173
        %v1175 = vpop.f32.mrb[0].mxu0
        %v1176 = vadd.f32 %v857, %v1175
        %1177 = vmatprep.mubr.f32.mxu0 0.0
        %1178 = vmatmul.mubr.f32.gmra.mrb[0].mxu0 %v775
        %v1179 = vpop.f32.mrb[0].mxu0
        %v1180 = vadd.f32 %v862, %v1179
        %v1181 = vpop.f32.mrb[0].mxu0
        %v1182 = vadd.f32 %v862, %v1181
        %1183 = vmatprep.mubr.f32.mxu0 0.0
        %1184 = vmatmul.mubr.f32.gmra.mrb[0].mxu0 %v776
        %v1185 = vpop.f32.mrb[0].mxu0
        %v1186 = vadd.f32 %v867, %v1185
        %v1187 = vpop.f32.mrb[0].mxu0
        %v1188 = vadd.f32 %v867, %v1187
        %1189 = vmatprep.mubr.f32.mxu0 0.0
        %1190 = vmatmul.mubr.f32.gmra.mrb[0].mxu0 %v777
        %v1191 = vpop.f32.mrb[0].mxu0
        %v1192 = vadd.f32 %v872, %v1191
        %v1193 = vpop.f32.mrb[0].mxu0
        %v1194 = vadd.f32 %v872, %v1193
        %1195 = vdwg.mxu0
        %v1196 = vmax.f32 %v941, 0.0
        %v1197 = vmax.f32 %v943, 0.0
        %v1198 = vmax.f32 %v1102, 0.0
        %v1199 = vmax.f32 %v1104, 0.0
        %v1200 = vmax.f32 %v947, 0.0
        %v1201 = vmax.f32 %v949, 0.0
        %v1202 = vmax.f32 %v1108, 0.0
        %v1203 = vmax.f32 %v1110, 0.0
        %v1204 = vmax.f32 %v953, 0.0
        %v1205 = vmax.f32 %v955, 0.0
        %v1206 = vmax.f32 %v1114, 0.0
        %v1207 = vmax.f32 %v1116, 0.0
        %v1208 = vmax.f32 %v959, 0.0
        %v1209 = vmax.f32 %v961, 0.0
        %v1210 = vmax.f32 %v1120, 0.0
        %v1211 = vmax.f32 %v1122, 0.0
        %v1212 = vmax.f32 %v965, 0.0
        %v1213 = vmax.f32 %v967, 0.0
        %v1214 = vmax.f32 %v1126, 0.0
        %v1215 = vmax.f32 %v1128, 0.0
        %v1216 = vmax.f32 %v971, 0.0
        %v1217 = vmax.f32 %v973, 0.0
        %v1218 = vmax.f32 %v1132, 0.0
        %v1219 = vmax.f32 %v1134, 0.0
        %v1220 = vmax.f32 %v977, 0.0
        %v1221 = vmax.f32 %v979, 0.0
        %v1222 = vmax.f32 %v1138, 0.0
        %v1223 = vmax.f32 %v1140, 0.0
        %v1224 = vmax.f32 %v983, 0.0
        %v1225 = vmax.f32 %v985, 0.0
        %v1226 = vmax.f32 %v1144, 0.0
        %v1227 = vmax.f32 %v1146, 0.0
        %v1228 = vmax.f32 %v989, 0.0
        %v1229 = vmax.f32 %v991, 0.0
        %v1230 = vmax.f32 %v1150, 0.0
        %v1231 = vmax.f32 %v1152, 0.0
        %v1232 = vmax.f32 %v995, 0.0
        %v1233 = vmax.f32 %v997, 0.0
        %v1234 = vmax.f32 %v1156, 0.0
        %v1235 = vmax.f32 %v1158, 0.0
        %v1236 = vmax.f32 %v1001, 0.0
        %v1237 = vmax.f32 %v1003, 0.0
        %v1238 = vmax.f32 %v1162, 0.0
        %v1239 = vmax.f32 %v1164, 0.0
        %v1240 = vmax.f32 %v1007, 0.0
        %v1241 = vmax.f32 %v1009, 0.0
        %v1242 = vmax.f32 %v1168, 0.0
        %v1243 = vmax.f32 %v1170, 0.0
        %v1244 = vmax.f32 %v1013, 0.0
        %v1245 = vmax.f32 %v1015, 0.0
        %v1246 = vmax.f32 %v1174, 0.0
        %v1247 = vmax.f32 %v1176, 0.0
        %v1248 = vmax.f32 %v1019, 0.0
        %v1249 = vmax.f32 %v1021, 0.0
        %v1250 = vmax.f32 %v1180, 0.0
        %v1251 = vmax.f32 %v1182, 0.0
        %v1252 = vmax.f32 %v1025, 0.0
        %v1253 = vmax.f32 %v1027, 0.0
        %v1254 = vmax.f32 %v1186, 0.0
        %v1255 = vmax.f32 %v1188, 0.0
        %v1256 = vmax.f32 %v1031, 0.0
        %v1257 = vmax.f32 %v1033, 0.0
        %v1258 = vmax.f32 %v1192, 0.0
        %v1259 = vmax.f32 %v1194, 0.0
        %v1260 = vld [vmem:[%s5] sm:$0xff]
        %v1261 = vld [vmem:[%s5 + $0x8] sm:$0xff]
        %v1262 = vld [vmem:[%s5 + $0x10] sm:$0xff]
        %v1263 = vld [vmem:[%s5 + $0x18] sm:$0xff]
        %v1264 = vld [vmem:[%s5 + $0x20] sm:$0xff]
        %v1265 = vld [vmem:[%s5 + $0x28] sm:$0xff]
        %v1266 = vld [vmem:[%s5 + $0x30] sm:$0xff]
        %v1267 = vld [vmem:[%s5 + $0x38] sm:$0xff]
        %v1268 = vld [vmem:[%s5 + $0x40] sm:$0xff]
        %v1269 = vld [vmem:[%s5 + $0x48] sm:$0xff]
        %v1270 = vld [vmem:[%s5 + $0x50] sm:$0xff]
        %v1271 = vld [vmem:[%s5 + $0x58] sm:$0xff]
        %v1272 = vld [vmem:[%s5 + $0x60] sm:$0xff]
        %v1273 = vld [vmem:[%s5 + $0x68] sm:$0xff]
        %v1274 = vld [vmem:[%s5 + $0x70] sm:$0xff]
        %v1275 = vld [vmem:[%s5 + $0x78] sm:$0xff]
        %v1276 = vld [vmem:[%s6] sm:$0xff]
        %v1277 = vld [vmem:[%s6 + $0x8] sm:$0xff]
        %v1278 = vld [vmem:[%s6 + $0x10] sm:$0xff]
        %v1279 = vld [vmem:[%s6 + $0x18] sm:$0xff]
        %v1280 = vld [vmem:[%s6 + $0x20] sm:$0xff]
        %v1281 = vld [vmem:[%s6 + $0x28] sm:$0xff]
        %v1282 = vld [vmem:[%s6 + $0x30] sm:$0xff]
        %v1283 = vld [vmem:[%s6 + $0x38] sm:$0xff]
        %v1284 = vld [vmem:[%s6 + $0x40] sm:$0xff]
        %v1285 = vld [vmem:[%s6 + $0x48] sm:$0xff]
        %v1286 = vld [vmem:[%s6 + $0x50] sm:$0xff]
        %v1287 = vld [vmem:[%s6 + $0x58] sm:$0xff]
        %v1288 = vld [vmem:[%s6 + $0x60] sm:$0xff]
        %v1289 = vld [vmem:[%s6 + $0x68] sm:$0xff]
        %v1290 = vld [vmem:[%s6 + $0x70] sm:$0xff]
        %v1291 = vld [vmem:[%s6 + $0x78] sm:$0xff]
        %1293 = vset.pattern.permute.xlu0 0
        %1294 = vperm.xlu0 %1293, %v1276
        %v1295 = vpop.permute.xlu0 %1294
        %1298 = vset.pattern.permute.xlu0 0
        %1299 = vperm.xlu0 %1298, %v1277
        %v1300 = vpop.permute.xlu0 %1299
        %1303 = vset.pattern.permute.xlu0 0
        %1304 = vperm.xlu0 %1303, %v1278
        %v1305 = vpop.permute.xlu0 %1304
        %1308 = vset.pattern.permute.xlu0 0
        %1309 = vperm.xlu0 %1308, %v1279
        %v1310 = vpop.permute.xlu0 %1309
        %1313 = vset.pattern.permute.xlu0 0
        %1314 = vperm.xlu0 %1313, %v1280
        %v1315 = vpop.permute.xlu0 %1314
        %1318 = vset.pattern.permute.xlu0 0
        %1319 = vperm.xlu0 %1318, %v1281
        %v1320 = vpop.permute.xlu0 %1319
        %1323 = vset.pattern.permute.xlu0 0
        %1324 = vperm.xlu0 %1323, %v1282
        %v1325 = vpop.permute.xlu0 %1324
        %1328 = vset.pattern.permute.xlu0 0
        %1329 = vperm.xlu0 %1328, %v1283
        %v1330 = vpop.permute.xlu0 %1329
        %1333 = vset.pattern.permute.xlu0 0
        %1334 = vperm.xlu0 %1333, %v1284
        %v1335 = vpop.permute.xlu0 %1334
        %1338 = vset.pattern.permute.xlu0 0
        %1339 = vperm.xlu0 %1338, %v1285
        %v1340 = vpop.permute.xlu0 %1339
        %1343 = vset.pattern.permute.xlu0 0
        %1344 = vperm.xlu0 %1343, %v1286
        %v1345 = vpop.permute.xlu0 %1344
        %1348 = vset.pattern.permute.xlu0 0
        %1349 = vperm.xlu0 %1348, %v1287
        %v1350 = vpop.permute.xlu0 %1349
        %1353 = vset.pattern.permute.xlu0 0
        %1354 = vperm.xlu0 %1353, %v1288
        %v1355 = vpop.permute.xlu0 %1354
        %1358 = vset.pattern.permute.xlu0 0
        %1359 = vperm.xlu0 %1358, %v1289
        %v1360 = vpop.permute.xlu0 %1359
        %1363 = vset.pattern.permute.xlu0 0
        %1364 = vperm.xlu0 %1363, %v1290
        %v1365 = vpop.permute.xlu0 %1364
        %1368 = vset.pattern.permute.xlu0 0
        %1369 = vperm.xlu0 %1368, %v1291
        %v1370 = vpop.permute.xlu0 %1369
        %1372 = vmatprep.subr.mxu0 %v1197
        %1373 = vmatpush1.msra.mxu0 %v1196
        %1374 = vmatprep.subr.mxu0 %v1201
        %1375 = vmatpush1.msra.mxu0 %v1200
        %1376 = vmatprep.subr.mxu0 %v1205
        %1377 = vmatpush1.msra.mxu0 %v1204
        %1378 = vmatprep.subr.mxu0 %v1209
        %1379 = vmatpush1.msra.mxu0 %v1208
        %1380 = vmatprep.subr.mxu0 %v1213
        %1381 = vmatpush1.msra.mxu0 %v1212
        %1382 = vmatprep.subr.mxu0 %v1217
        %1383 = vmatpush1.msra.mxu0 %v1216
        %1384 = vmatprep.subr.mxu0 %v1221
        %1385 = vmatpush1.msra.mxu0 %v1220
        %1386 = vmatprep.subr.mxu0 %v1225
        %1387 = vmatpush1.msra.mxu0 %v1224
        %1388 = vmatprep.subr.mxu0 %v1229
        %1389 = vmatpush1.msra.mxu0 %v1228
        %1390 = vmatprep.subr.mxu0 %v1233
        %1391 = vmatpush1.msra.mxu0 %v1232
        %1392 = vmatprep.subr.mxu0 %v1237
        %1393 = vmatpush1.msra.mxu0 %v1236
        %1394 = vmatprep.subr.mxu0 %v1241
        %1395 = vmatpush1.msra.mxu0 %v1240
        %1396 = vmatprep.subr.mxu0 %v1245
        %1397 = vmatpush1.msra.mxu0 %v1244
        %1398 = vmatprep.subr.mxu0 %v1249
        %1399 = vmatpush1.msra.mxu0 %v1248
        %1400 = vmatprep.subr.mxu0 %v1253
        %1401 = vmatpush1.msra.mxu0 %v1252
        %1402 = vmatprep.subr.mxu0 %v1257
        %1403 = vmatpush1.msra.mxu0 %v1256
        %1404 = vmatprep.subr.mxu0 0.0
        %1405 = vmatpush1.msra.mxu0 0.0
        %1406 = vmatprep.subr.mxu0 0.0
        %1407 = vmatpush1.msra.mxu0 0.0
        %1408 = vmatprep.subr.mxu0 0.0
        %1409 = vmatpush1.msra.mxu0 0.0
        %1410 = vmatprep.subr.mxu0 0.0
        %1411 = vmatpush1.msra.mxu0 0.0
        %1412 = vmatprep.subr.mxu0 0.0
        %1413 = vmatpush1.msra.mxu0 0.0
        %1414 = vmatprep.subr.mxu0 0.0
        %1415 = vmatpush1.msra.mxu0 0.0
        %1416 = vmatprep.subr.mxu0 0.0
        %1417 = vmatpush1.msra.mxu0 0.0
        %1418 = vmatprep.subr.mxu0 0.0
        %1419 = vmatpush1.msra.mxu0 0.0
        %1420 = vmatprep.subr.mxu0 0.0
        %1421 = vmatpush1.msra.mxu0 0.0
        %1422 = vmatprep.subr.mxu0 0.0
        %1423 = vmatpush1.msra.mxu0 0.0
        %1424 = vmatprep.subr.mxu0 0.0
        %1425 = vmatpush1.msra.mxu0 0.0
        %1426 = vmatprep.subr.mxu0 0.0
        %1427 = vmatpush1.msra.mxu0 0.0
        %1428 = vmatprep.subr.mxu0 0.0
        %1429 = vmatpush1.msra.mxu0 0.0
        %1430 = vmatprep.subr.mxu0 0.0
        %1431 = vmatpush1.msra.mxu0 0.0
        %1432 = vmatprep.subr.mxu0 0.0
        %1433 = vmatpush1.msra.mxu0 0.0
        %1434 = vmatprep.subr.mxu0 0.0
        %1435 = vmatpush1.msra.mxu0 0.0
        %1436 = vmatprep.mubr.f32.mxu0 0.0
        %1437 = vmatmul.mubr.f32.gmra.mrb[0].mxu0 %v1260
        %v1438 = vpop.f32.mrb[0].mxu0
        %v1439 = vadd.f32 %v1295, %v1438
        %v1440 = vpop.f32.mrb[0].mxu0
        %v1441 = vadd.f32 %v1295, %v1440
        %1442 = vmatprep.mubr.f32.mxu0 0.0
        %1443 = vmatmul.mubr.f32.gmra.mrb[0].mxu0 %v1261
        %v1444 = vpop.f32.mrb[0].mxu0
        %v1445 = vadd.f32 %v1300, %v1444
        %v1446 = vpop.f32.mrb[0].mxu0
        %v1447 = vadd.f32 %v1300, %v1446
        %1448 = vmatprep.mubr.f32.mxu0 0.0
        %1449 = vmatmul.mubr.f32.gmra.mrb[0].mxu0 %v1262
        %v1450 = vpop.f32.mrb[0].mxu0
        %v1451 = vadd.f32 %v1305, %v1450
        %v1452 = vpop.f32.mrb[0].mxu0
        %v1453 = vadd.f32 %v1305, %v1452
        %1454 = vmatprep.mubr.f32.mxu0 0.0
        %1455 = vmatmul.mubr.f32.gmra.mrb[0].mxu0 %v1263
        %v1456 = vpop.f32.mrb[0].mxu0
        %v1457 = vadd.f32 %v1310, %v1456
        %v1458 = vpop.f32.mrb[0].mxu0
        %v1459 = vadd.f32 %v1310, %v1458
        %1460 = vmatprep.mubr.f32.mxu0 0.0
        %1461 = vmatmul.mubr.f32.gmra.mrb[0].mxu0 %v1264
        %v1462 = vpop.f32.mrb[0].mxu0
        %v1463 = vadd.f32 %v1315, %v1462
        %v1464 = vpop.f32.mrb[0].mxu0
        %v1465 = vadd.f32 %v1315, %v1464
        %1466 = vmatprep.mubr.f32.mxu0 0.0
        %1467 = vmatmul.mubr.f32.gmra.mrb[0].mxu0 %v1265
        %v1468 = vpop.f32.mrb[0].mxu0
        %v1469 = vadd.f32 %v1320, %v1468
        %v1470 = vpop.f32.mrb[0].mxu0
        %v1471 = vadd.f32 %v1320, %v1470
        %1472 = vmatprep.mubr.f32.mxu0 0.0
        %1473 = vmatmul.mubr.f32.gmra.mrb[0].mxu0 %v1266
        %v1474 = vpop.f32.mrb[0].mxu0
        %v1475 = vadd.f32 %v1325, %v1474
        %v1476 = vpop.f32.mrb[0].mxu0
        %v1477 = vadd.f32 %v1325, %v1476
        %1478 = vmatprep.mubr.f32.mxu0 0.0
        %1479 = vmatmul.mubr.f32.gmra.mrb[0].mxu0 %v1267
        %v1480 = vpop.f32.mrb[0].mxu0
        %v1481 = vadd.f32 %v1330, %v1480
        %v1482 = vpop.f32.mrb[0].mxu0
        %v1483 = vadd.f32 %v1330, %v1482
        %1484 = vmatprep.mubr.f32.mxu0 0.0
        %1485 = vmatmul.mubr.f32.gmra.mrb[0].mxu0 %v1268
        %v1486 = vpop.f32.mrb[0].mxu0
        %v1487 = vadd.f32 %v1335, %v1486
        %v1488 = vpop.f32.mrb[0].mxu0
        %v1489 = vadd.f32 %v1335, %v1488
        %1490 = vmatprep.mubr.f32.mxu0 0.0
        %1491 = vmatmul.mubr.f32.gmra.mrb[0].mxu0 %v1269
        %v1492 = vpop.f32.mrb[0].mxu0
        %v1493 = vadd.f32 %v1340, %v1492
        %v1494 = vpop.f32.mrb[0].mxu0
        %v1495 = vadd.f32 %v1340, %v1494
        %1496 = vmatprep.mubr.f32.mxu0 0.0
        %1497 = vmatmul.mubr.f32.gmra.mrb[0].mxu0 %v1270
        %v1498 = vpop.f32.mrb[0].mxu0
        %v1499 = vadd.f32 %v1345, %v1498
        %v1500 = vpop.f32.mrb[0].mxu0
        %v1501 = vadd.f32 %v1345, %v1500
        %1502 = vmatprep.mubr.f32.mxu0 0.0
        %1503 = vmatmul.mubr.f32.gmra.mrb[0].mxu0 %v1271
        %v1504 = vpop.f32.mrb[0].mxu0
        %v1505 = vadd.f32 %v1350, %v1504
        %v1506 = vpop.f32.mrb[0].mxu0
        %v1507 = vadd.f32 %v1350, %v1506
        %1508 = vmatprep.mubr.f32.mxu0 0.0
        %1509 = vmatmul.mubr.f32.gmra.mrb[0].mxu0 %v1272
        %v1510 = vpop.f32.mrb[0].mxu0
        %v1511 = vadd.f32 %v1355, %v1510
        %v1512 = vpop.f32.mrb[0].mxu0
        %v1513 = vadd.f32 %v1355, %v1512
        %1514 = vmatprep.mubr.f32.mxu0 0.0
        %1515 = vmatmul.mubr.f32.gmra.mrb[0].mxu0 %v1273
        %v1516 = vpop.f32.mrb[0].mxu0
        %v1517 = vadd.f32 %v1360, %v1516
        %v1518 = vpop.f32.mrb[0].mxu0
        %v1519 = vadd.f32 %v1360, %v1518
        %1520 = vmatprep.mubr.f32.mxu0 0.0
        %1521 = vmatmul.mubr.f32.gmra.mrb[0].mxu0 %v1274
        %v1522 = vpop.f32.mrb[0].mxu0
        %v1523 = vadd.f32 %v1365, %v1522
        %v1524 = vpop.f32.mrb[0].mxu0
        %v1525 = vadd.f32 %v1365, %v1524
        %1526 = vmatprep.mubr.f32.mxu0 0.0
        %1527 = vmatmul.mubr.f32.gmra.mrb[0].mxu0 %v1275
        %v1528 = vpop.f32.mrb[0].mxu0
        %v1529 = vadd.f32 %v1370, %v1528
        %v1530 = vpop.f32.mrb[0].mxu0
        %v1531 = vadd.f32 %v1370, %v1530
        %1532 = vdwg.mxu0
        %1533 = vmatprep.subr.mxu0 %v1199
        %1534 = vmatpush1.msra.mxu0 %v1198
        %1535 = vmatprep.subr.mxu0 %v1203
        %1536 = vmatpush1.msra.mxu0 %v1202
        %1537 = vmatprep.subr.mxu0 %v1207
        %1538 = vmatpush1.msra.mxu0 %v1206
        %1539 = vmatprep.subr.mxu0 %v1211
        %1540 = vmatpush1.msra.mxu0 %v1210
        %1541 = vmatprep.subr.mxu0 %v1215
        %1542 = vmatpush1.msra.mxu0 %v1214
        %1543 = vmatprep.subr.mxu0 %v1219
        %1544 = vmatpush1.msra.mxu0 %v1218
        %1545 = vmatprep.subr.mxu0 %v1223
        %1546 = vmatpush1.msra.mxu0 %v1222
        %1547 = vmatprep.subr.mxu0 %v1227
        %1548 = vmatpush1.msra.mxu0 %v1226
        %1549 = vmatprep.subr.mxu0 %v1231
        %1550 = vmatpush1.msra.mxu0 %v1230
        %1551 = vmatprep.subr.mxu0 %v1235
        %1552 = vmatpush1.msra.mxu0 %v1234
        %1553 = vmatprep.subr.mxu0 %v1239
        %1554 = vmatpush1.msra.mxu0 %v1238
        %1555 = vmatprep.subr.mxu0 %v1243
        %1556 = vmatpush1.msra.mxu0 %v1242
        %1557 = vmatprep.subr.mxu0 %v1247
        %1558 = vmatpush1.msra.mxu0 %v1246
        %1559 = vmatprep.subr.mxu0 %v1251
        %1560 = vmatpush1.msra.mxu0 %v1250
        %1561 = vmatprep.subr.mxu0 %v1255
        %1562 = vmatpush1.msra.mxu0 %v1254
        %1563 = vmatprep.subr.mxu0 %v1259
        %1564 = vmatpush1.msra.mxu0 %v1258
        %1565 = vmatprep.subr.mxu0 0.0
        %1566 = vmatpush1.msra.mxu0 0.0
        %1567 = vmatprep.subr.mxu0 0.0
        %1568 = vmatpush1.msra.mxu0 0.0
        %1569 = vmatprep.subr.mxu0 0.0
        %1570 = vmatpush1.msra.mxu0 0.0
        %1571 = vmatprep.subr.mxu0 0.0
        %1572 = vmatpush1.msra.mxu0 0.0
        %1573 = vmatprep.subr.mxu0 0.0
        %1574 = vmatpush1.msra.mxu0 0.0
        %1575 = vmatprep.subr.mxu0 0.0
        %1576 = vmatpush1.msra.mxu0 0.0
        %1577 = vmatprep.subr.mxu0 0.0
        %1578 = vmatpush1.msra.mxu0 0.0
        %1579 = vmatprep.subr.mxu0 0.0
        %1580 = vmatpush1.msra.mxu0 0.0
        %1581 = vmatprep.subr.mxu0 0.0
        %1582 = vmatpush1.msra.mxu0 0.0
        %1583 = vmatprep.subr.mxu0 0.0
        %1584 = vmatpush1.msra.mxu0 0.0
        %1585 = vmatprep.subr.mxu0 0.0
        %1586 = vmatpush1.msra.mxu0 0.0
        %1587 = vmatprep.subr.mxu0 0.0
        %1588 = vmatpush1.msra.mxu0 0.0
        %1589 = vmatprep.subr.mxu0 0.0
        %1590 = vmatpush1.msra.mxu0 0.0
        %1591 = vmatprep.subr.mxu0 0.0
        %1592 = vmatpush1.msra.mxu0 0.0
        %1593 = vmatprep.subr.mxu0 0.0
        %1594 = vmatpush1.msra.mxu0 0.0
        %1595 = vmatprep.subr.mxu0 0.0
        %1596 = vmatpush1.msra.mxu0 0.0
        %1597 = vmatprep.mubr.f32.mxu0 0.0
        %1598 = vmatmul.mubr.f32.gmra.mrb[0].mxu0 %v1260
        %v1599 = vpop.f32.mrb[0].mxu0
        %v1600 = vadd.f32 %v1295, %v1599
        %v1601 = vpop.f32.mrb[0].mxu0
        %v1602 = vadd.f32 %v1295, %v1601
        %1603 = vmatprep.mubr.f32.mxu0 0.0
        %1604 = vmatmul.mubr.f32.gmra.mrb[0].mxu0 %v1261
        %v1605 = vpop.f32.mrb[0].mxu0
        %v1606 = vadd.f32 %v1300, %v1605
        %v1607 = vpop.f32.mrb[0].mxu0
        %v1608 = vadd.f32 %v1300, %v1607
        %1609 = vmatprep.mubr.f32.mxu0 0.0
        %1610 = vmatmul.mubr.f32.gmra.mrb[0].mxu0 %v1262
        %v1611 = vpop.f32.mrb[0].mxu0
        %v1612 = vadd.f32 %v1305, %v1611
        %v1613 = vpop.f32.mrb[0].mxu0
        %v1614 = vadd.f32 %v1305, %v1613
        %1615 = vmatprep.mubr.f32.mxu0 0.0
        %1616 = vmatmul.mubr.f32.gmra.mrb[0].mxu0 %v1263
        %v1617 = vpop.f32.mrb[0].mxu0
        %v1618 = vadd.f32 %v1310, %v1617
        %v1619 = vpop.f32.mrb[0].mxu0
        %v1620 = vadd.f32 %v1310, %v1619
        %1621 = vmatprep.mubr.f32.mxu0 0.0
        %1622 = vmatmul.mubr.f32.gmra.mrb[0].mxu0 %v1264
        %v1623 = vpop.f32.mrb[0].mxu0
        %v1624 = vadd.f32 %v1315, %v1623
        %v1625 = vpop.f32.mrb[0].mxu0
        %v1626 = vadd.f32 %v1315, %v1625
        %1627 = vmatprep.mubr.f32.mxu0 0.0
        %1628 = vmatmul.mubr.f32.gmra.mrb[0].mxu0 %v1265
        %v1629 = vpop.f32.mrb[0].mxu0
        %v1630 = vadd.f32 %v1320, %v1629
        %v1631 = vpop.f32.mrb[0].mxu0
        %v1632 = vadd.f32 %v1320, %v1631
        %1633 = vmatprep.mubr.f32.mxu0 0.0
        %1634 = vmatmul.mubr.f32.gmra.mrb[0].mxu0 %v1266
        %v1635 = vpop.f32.mrb[0].mxu0
        %v1636 = vadd.f32 %v1325, %v1635
        %v1637 = vpop.f32.mrb[0].mxu0
        %v1638 = vadd.f32 %v1325, %v1637
        %1639 = vmatprep.mubr.f32.mxu0 0.0
        %1640 = vmatmul.mubr.f32.gmra.mrb[0].mxu0 %v1267
        %v1641 = vpop.f32.mrb[0].mxu0
        %v1642 = vadd.f32 %v1330, %v1641
        %v1643 = vpop.f32.mrb[0].mxu0
        %v1644 = vadd.f32 %v1330, %v1643
        %1645 = vmatprep.mubr.f32.mxu0 0.0
        %1646 = vmatmul.mubr.f32.gmra.mrb[0].mxu0 %v1268
        %v1647 = vpop.f32.mrb[0].mxu0
        %v1648 = vadd.f32 %v1335, %v1647
        %v1649 = vpop.f32.mrb[0].mxu0
        %v1650 = vadd.f32 %v1335, %v1649
        %1651 = vmatprep.mubr.f32.mxu0 0.0
        %1652 = vmatmul.mubr.f32.gmra.mrb[0].mxu0 %v1269
        %v1653 = vpop.f32.mrb[0].mxu0
        %v1654 = vadd.f32 %v1340, %v1653
        %v1655 = vpop.f32.mrb[0].mxu0
        %v1656 = vadd.f32 %v1340, %v1655
        %1657 = vmatprep.mubr.f32.mxu0 0.0
        %1658 = vmatmul.mubr.f32.gmra.mrb[0].mxu0 %v1270
        %v1659 = vpop.f32.mrb[0].mxu0
        %v1660 = vadd.f32 %v1345, %v1659
        %v1661 = vpop.f32.mrb[0].mxu0
        %v1662 = vadd.f32 %v1345, %v1661
        %1663 = vmatprep.mubr.f32.mxu0 0.0
        %1664 = vmatmul.mubr.f32.gmra.mrb[0].mxu0 %v1271
        %v1665 = vpop.f32.mrb[0].mxu0
        %v1666 = vadd.f32 %v1350, %v1665
        %v1667 = vpop.f32.mrb[0].mxu0
        %v1668 = vadd.f32 %v1350, %v1667
        %1669 = vmatprep.mubr.f32.mxu0 0.0
        %1670 = vmatmul.mubr.f32.gmra.mrb[0].mxu0 %v1272
        %v1671 = vpop.f32.mrb[0].mxu0
        %v1672 = vadd.f32 %v1355, %v1671
        %v1673 = vpop.f32.mrb[0].mxu0
        %v1674 = vadd.f32 %v1355, %v1673
        %1675 = vmatprep.mubr.f32.mxu0 0.0
        %1676 = vmatmul.mubr.f32.gmra.mrb[0].mxu0 %v1273
        %v1677 = vpop.f32.mrb[0].mxu0
        %v1678 = vadd.f32 %v1360, %v1677
        %v1679 = vpop.f32.mrb[0].mxu0
        %v1680 = vadd.f32 %v1360, %v1679
        %1681 = vmatprep.mubr.f32.mxu0 0.0
        %1682 = vmatmul.mubr.f32.gmra.mrb[0].mxu0 %v1274
        %v1683 = vpop.f32.mrb[0].mxu0
        %v1684 = vadd.f32 %v1365, %v1683
        %v1685 = vpop.f32.mrb[0].mxu0
        %v1686 = vadd.f32 %v1365, %v1685
        %1687 = vmatprep.mubr.f32.mxu0 0.0
        %1688 = vmatmul.mubr.f32.gmra.mrb[0].mxu0 %v1275
        %v1689 = vpop.f32.mrb[0].mxu0
        %v1690 = vadd.f32 %v1370, %v1689
        %v1691 = vpop.f32.mrb[0].mxu0
        %v1692 = vadd.f32 %v1370, %v1691
        %1693 = vdwg.mxu0
        %v1694 = vadd.f32 %v698, %v1439
        %v1695 = vadd.f32 %v699, %v1441
        %v1696 = vadd.f32 %v700, %v1600
        %v1697 = vadd.f32 %v701, %v1602
        %v1698 = vadd.f32 %v702, %v1445
        %v1699 = vadd.f32 %v703, %v1447
        %v1700 = vadd.f32 %v704, %v1606
        %v1701 = vadd.f32 %v705, %v1608
        %v1702 = vadd.f32 %v706, %v1451
        %v1703 = vadd.f32 %v707, %v1453
        %v1704 = vadd.f32 %v708, %v1612
        %v1705 = vadd.f32 %v709, %v1614
        %v1706 = vadd.f32 %v710, %v1457
        %v1707 = vadd.f32 %v711, %v1459
        %v1708 = vadd.f32 %v712, %v1618
        %v1709 = vadd.f32 %v713, %v1620
        %v1710 = vadd.f32 %v714, %v1463
        %v1711 = vadd.f32 %v715, %v1465
        %v1712 = vadd.f32 %v716, %v1624
        %v1713 = vadd.f32 %v717, %v1626
        %v1714 = vadd.f32 %v718, %v1469
        %v1715 = vadd.f32 %v719, %v1471
        %v1716 = vadd.f32 %v720, %v1630
        %v1717 = vadd.f32 %v721, %v1632
        %v1718 = vadd.f32 %v722, %v1475
        %v1719 = vadd.f32 %v723, %v1477
        %v1720 = vadd.f32 %v724, %v1636
        %v1721 = vadd.f32 %v725, %v1638
        %v1722 = vadd.f32 %v726, %v1481
        %v1723 = vadd.f32 %v727, %v1483
        %v1724 = vadd.f32 %v728, %v1642
        %v1725 = vadd.f32 %v729, %v1644
        %v1726 = vadd.f32 %v730, %v1487
        %v1727 = vadd.f32 %v731, %v1489
        %v1728 = vadd.f32 %v732, %v1648
        %v1729 = vadd.f32 %v733, %v1650
        %v1730 = vadd.f32 %v734, %v1493
        %v1731 = vadd.f32 %v735, %v1495
        %v1732 = vadd.f32 %v736, %v1654
        %v1733 = vadd.f32 %v737, %v1656
        %v1734 = vadd.f32 %v738, %v1499
        %v1735 = vadd.f32 %v739, %v1501
        %v1736 = vadd.f32 %v740, %v1660
        %v1737 = vadd.f32 %v741, %v1662
        %v1738 = vadd.f32 %v742, %v1505
        %v1739 = vadd.f32 %v743, %v1507
        %v1740 = vadd.f32 %v744, %v1666
        %v1741 = vadd.f32 %v745, %v1668
        %v1742 = vadd.f32 %v746, %v1511
        %v1743 = vadd.f32 %v747, %v1513
        %v1744 = vadd.f32 %v748, %v1672
        %v1745 = vadd.f32 %v749, %v1674
        %v1746 = vadd.f32 %v750, %v1517
        %v1747 = vadd.f32 %v751, %v1519
        %v1748 = vadd.f32 %v752, %v1678
        %v1749 = vadd.f32 %v753, %v1680
        %v1750 = vadd.f32 %v754, %v1523
        %v1751 = vadd.f32 %v755, %v1525
        %v1752 = vadd.f32 %v756, %v1684
        %v1753 = vadd.f32 %v757, %v1686
        %v1754 = vadd.f32 %v758, %v1529
        %v1755 = vadd.f32 %v759, %v1531
        %v1756 = vadd.f32 %v760, %v1690
        %v1757 = vadd.f32 %v761, %v1692
        %v1758 = vmax.f32 %v1694, 0.0
        %v1759 = vmax.f32 %v1695, 0.0
        %v1760 = vmax.f32 %v1696, 0.0
        %v1761 = vmax.f32 %v1697, 0.0
        %v1762 = vmax.f32 %v1698, 0.0
        %v1763 = vmax.f32 %v1699, 0.0
        %v1764 = vmax.f32 %v1700, 0.0
        %v1765 = vmax.f32 %v1701, 0.0
        %v1766 = vmax.f32 %v1702, 0.0
        %v1767 = vmax.f32 %v1703, 0.0
        %v1768 = vmax.f32 %v1704, 0.0
        %v1769 = vmax.f32 %v1705, 0.0
        %v1770 = vmax.f32 %v1706, 0.0
        %v1771 = vmax.f32 %v1707, 0.0
        %v1772 = vmax.f32 %v1708, 0.0
        %v1773 = vmax.f32 %v1709, 0.0
        %v1774 = vmax.f32 %v1710, 0.0
        %v1775 = vmax.f32 %v1711, 0.0
        %v1776 = vmax.f32 %v1712, 0.0
        %v1777 = vmax.f32 %v1713, 0.0
        %v1778 = vmax.f32 %v1714, 0.0
        %v1779 = vmax.f32 %v1715, 0.0
        %v1780 = vmax.f32 %v1716, 0.0
        %v1781 = vmax.f32 %v1717, 0.0
        %v1782 = vmax.f32 %v1718, 0.0
        %v1783 = vmax.f32 %v1719, 0.0
        %v1784 = vmax.f32 %v1720, 0.0
        %v1785 = vmax.f32 %v1721, 0.0
        %v1786 = vmax.f32 %v1722, 0.0
        %v1787 = vmax.f32 %v1723, 0.0
        %v1788 = vmax.f32 %v1724, 0.0
        %v1789 = vmax.f32 %v1725, 0.0
        %v1790 = vmax.f32 %v1726, 0.0
        %v1791 = vmax.f32 %v1727, 0.0
        %v1792 = vmax.f32 %v1728, 0.0
        %v1793 = vmax.f32 %v1729, 0.0
        %v1794 = vmax.f32 %v1730, 0.0
        %v1795 = vmax.f32 %v1731, 0.0
        %v1796 = vmax.f32 %v1732, 0.0
        %v1797 = vmax.f32 %v1733, 0.0
        %v1798 = vmax.f32 %v1734, 0.0
        %v1799 = vmax.f32 %v1735, 0.0
        %v1800 = vmax.f32 %v1736, 0.0
        %v1801 = vmax.f32 %v1737, 0.0
        %v1802 = vmax.f32 %v1738, 0.0
        %v1803 = vmax.f32 %v1739, 0.0
        %v1804 = vmax.f32 %v1740, 0.0
        %v1805 = vmax.f32 %v1741, 0.0
        %v1806 = vmax.f32 %v1742, 0.0
        %v1807 = vmax.f32 %v1743, 0.0
        %v1808 = vmax.f32 %v1744, 0.0
        %v1809 = vmax.f32 %v1745, 0.0
        %v1810 = vmax.f32 %v1746, 0.0
        %v1811 = vmax.f32 %v1747, 0.0
        %v1812 = vmax.f32 %v1748, 0.0
        %v1813 = vmax.f32 %v1749, 0.0
        %v1814 = vmax.f32 %v1750, 0.0
        %v1815 = vmax.f32 %v1751, 0.0
        %v1816 = vmax.f32 %v1752, 0.0
        %v1817 = vmax.f32 %v1753, 0.0
        %v1818 = vmax.f32 %v1754, 0.0
        %v1819 = vmax.f32 %v1755, 0.0
        %v1820 = vmax.f32 %v1756, 0.0
        %v1821 = vmax.f32 %v1757, 0.0
        %v1822 = vld [vmem:[%s7] sm:$0xff]
        %v1823 = vld [vmem:[%s7 + $0x8] sm:$0xff]
        %v1824 = vld [vmem:[%s7 + $0x10] sm:$0xff]
        %v1825 = vld [vmem:[%s7 + $0x18] sm:$0xff]
        %v1826 = vld [vmem:[%s8] sm:$0xff]
        %v1827 = vld [vmem:[%s8 + $0x8] sm:$0xff]
        %v1828 = vld [vmem:[%s8 + $0x10] sm:$0xff]
        %v1829 = vld [vmem:[%s8 + $0x18] sm:$0xff]
        %1831 = vset.pattern.permute.xlu0 0
        %1832 = vperm.xlu0 %1831, %v1826
        %v1833 = vpop.permute.xlu0 %1832
        %1836 = vset.pattern.permute.xlu0 0
        %1837 = vperm.xlu0 %1836, %v1827
        %v1838 = vpop.permute.xlu0 %1837
        %1841 = vset.pattern.permute.xlu0 0
        %1842 = vperm.xlu0 %1841, %v1828
        %v1843 = vpop.permute.xlu0 %1842
        %1846 = vset.pattern.permute.xlu0 0
        %1847 = vperm.xlu0 %1846, %v1829
        %v1848 = vpop.permute.xlu0 %1847
        %1850 = vmatprep.subr.mxu0 %v1759
        %1851 = vmatpush1.msra.mxu0 %v1758
        %1852 = vmatprep.subr.mxu0 %v1763
        %1853 = vmatpush1.msra.mxu0 %v1762
        %1854 = vmatprep.subr.mxu0 %v1767
        %1855 = vmatpush1.msra.mxu0 %v1766
        %1856 = vmatprep.subr.mxu0 %v1771
        %1857 = vmatpush1.msra.mxu0 %v1770
        %1858 = vmatprep.subr.mxu0 %v1775
        %1859 = vmatpush1.msra.mxu0 %v1774
        %1860 = vmatprep.subr.mxu0 %v1779
        %1861 = vmatpush1.msra.mxu0 %v1778
        %1862 = vmatprep.subr.mxu0 %v1783
        %1863 = vmatpush1.msra.mxu0 %v1782
        %1864 = vmatprep.subr.mxu0 %v1787
        %1865 = vmatpush1.msra.mxu0 %v1786
        %1866 = vmatprep.subr.mxu0 %v1791
        %1867 = vmatpush1.msra.mxu0 %v1790
        %1868 = vmatprep.subr.mxu0 %v1795
        %1869 = vmatpush1.msra.mxu0 %v1794
        %1870 = vmatprep.subr.mxu0 %v1799
        %1871 = vmatpush1.msra.mxu0 %v1798
        %1872 = vmatprep.subr.mxu0 %v1803
        %1873 = vmatpush1.msra.mxu0 %v1802
        %1874 = vmatprep.subr.mxu0 %v1807
        %1875 = vmatpush1.msra.mxu0 %v1806
        %1876 = vmatprep.subr.mxu0 %v1811
        %1877 = vmatpush1.msra.mxu0 %v1810
        %1878 = vmatprep.subr.mxu0 %v1815
        %1879 = vmatpush1.msra.mxu0 %v1814
        %1880 = vmatprep.subr.mxu0 %v1819
        %1881 = vmatpush1.msra.mxu0 %v1818
        %1882 = vmatprep.subr.mxu0 0.0
        %1883 = vmatpush1.msra.mxu0 0.0
        %1884 = vmatprep.subr.mxu0 0.0
        %1885 = vmatpush1.msra.mxu0 0.0
        %1886 = vmatprep.subr.mxu0 0.0
        %1887 = vmatpush1.msra.mxu0 0.0
        %1888 = vmatprep.subr.mxu0 0.0
        %1889 = vmatpush1.msra.mxu0 0.0
        %1890 = vmatprep.subr.mxu0 0.0
        %1891 = vmatpush1.msra.mxu0 0.0
        %1892 = vmatprep.subr.mxu0 0.0
        %1893 = vmatpush1.msra.mxu0 0.0
        %1894 = vmatprep.subr.mxu0 0.0
        %1895 = vmatpush1.msra.mxu0 0.0
        %1896 = vmatprep.subr.mxu0 0.0
        %1897 = vmatpush1.msra.mxu0 0.0
        %1898 = vmatprep.subr.mxu0 0.0
        %1899 = vmatpush1.msra.mxu0 0.0
        %1900 = vmatprep.subr.mxu0 0.0
        %1901 = vmatpush1.msra.mxu0 0.0
        %1902 = vmatprep.subr.mxu0 0.0
        %1903 = vmatpush1.msra.mxu0 0.0
        %1904 = vmatprep.subr.mxu0 0.0
        %1905 = vmatpush1.msra.mxu0 0.0
        %1906 = vmatprep.subr.mxu0 0.0
        %1907 = vmatpush1.msra.mxu0 0.0
        %1908 = vmatprep.subr.mxu0 0.0
        %1909 = vmatpush1.msra.mxu0 0.0
        %1910 = vmatprep.subr.mxu0 0.0
        %1911 = vmatpush1.msra.mxu0 0.0
        %1912 = vmatprep.subr.mxu0 0.0
        %1913 = vmatpush1.msra.mxu0 0.0
        %1914 = vmatprep.mubr.f32.mxu0 0.0
        %1915 = vmatmul.mubr.f32.gmra.mrb[0].mxu0 %v1822
        %v1916 = vpop.f32.mrb[0].mxu0
        %v1917 = vadd.f32 %v1833, %v1916
        %v1918 = vpop.f32.mrb[0].mxu0
        %v1919 = vadd.f32 %v1833, %v1918
        %1920 = vmatprep.mubr.f32.mxu0 0.0
        %1921 = vmatmul.mubr.f32.gmra.mrb[0].mxu0 %v1823
        %v1922 = vpop.f32.mrb[0].mxu0
        %v1923 = vadd.f32 %v1838, %v1922
        %v1924 = vpop.f32.mrb[0].mxu0
        %v1925 = vadd.f32 %v1838, %v1924
        %1926 = vmatprep.mubr.f32.mxu0 0.0
        %1927 = vmatmul.mubr.f32.gmra.mrb[0].mxu0 %v1824
        %v1928 = vpop.f32.mrb[0].mxu0
        %v1929 = vadd.f32 %v1843, %v1928
        %v1930 = vpop.f32.mrb[0].mxu0
        %v1931 = vadd.f32 %v1843, %v1930
        %1932 = vmatprep.mubr.f32.mxu0 0.0
        %1933 = vmatmul.mubr.f32.gmra.mrb[0].mxu0 %v1825
        %v1934 = vpop.f32.mrb[0].mxu0
        %v1935 = vadd.f32 %v1848, %v1934
        %v1936 = vpop.f32.mrb[0].mxu0
        %v1937 = vadd.f32 %v1848, %v1936
        %1938 = vdwg.mxu0
        %1939 = vmatprep.subr.mxu0 %v1761
        %1940 = vmatpush1.msra.mxu0 %v1760
        %1941 = vmatprep.subr.mxu0 %v1765
        %1942 = vmatpush1.msra.mxu0 %v1764
        %1943 = vmatprep.subr.mxu0 %v1769
        %1944 = vmatpush1.msra.mxu0 %v1768
        %1945 = vmatprep.subr.mxu0 %v1773
        %1946 = vmatpush1.msra.mxu0 %v1772
        %1947 = vmatprep.subr.mxu0 %v1777
        %1948 = vmatpush1.msra.mxu0 %v1776
        %1949 = vmatprep.subr.mxu0 %v1781
        %1950 = vmatpush1.msra.mxu0 %v1780
        %1951 = vmatprep.subr.mxu0 %v1785
        %1952 = vmatpush1.msra.mxu0 %v1784
        %1953 = vmatprep.subr.mxu0 %v1789
        %1954 = vmatpush1.msra.mxu0 %v1788
        %1955 = vmatprep.subr.mxu0 %v1793
        %1956 = vmatpush1.msra.mxu0 %v1792
        %1957 = vmatprep.subr.mxu0 %v1797
        %1958 = vmatpush1.msra.mxu0 %v1796
        %1959 = vmatprep.subr.mxu0 %v1801
        %1960 = vmatpush1.msra.mxu0 %v1800
        %1961 = vmatprep.subr.mxu0 %v1805
        %1962 = vmatpush1.msra.mxu0 %v1804
        %1963 = vmatprep.subr.mxu0 %v1809
        %1964 = vmatpush1.msra.mxu0 %v1808
        %1965 = vmatprep.subr.mxu0 %v1813
        %1966 = vmatpush1.msra.mxu0 %v1812
        %1967 = vmatprep.subr.mxu0 %v1817
        %1968 = vmatpush1.msra.mxu0 %v1816
        %1969 = vmatprep.subr.mxu0 %v1821
        %1970 = vmatpush1.msra.mxu0 %v1820
        %1971 = vmatprep.subr.mxu0 0.0
        %1972 = vmatpush1.msra.mxu0 0.0
        %1973 = vmatprep.subr.mxu0 0.0
        %1974 = vmatpush1.msra.mxu0 0.0
        %1975 = vmatprep.subr.mxu0 0.0
        %1976 = vmatpush1.msra.mxu0 0.0
        %1977 = vmatprep.subr.mxu0 0.0
        %1978 = vmatpush1.msra.mxu0 0.0
        %1979 = vmatprep.subr.mxu0 0.0
        %1980 = vmatpush1.msra.mxu0 0.0
        %1981 = vmatprep.subr.mxu0 0.0
        %1982 = vmatpush1.msra.mxu0 0.0
        %1983 = vmatprep.subr.mxu0 0.0
        %1984 = vmatpush1.msra.mxu0 0.0
        %1985 = vmatprep.subr.mxu0 0.0
        %1986 = vmatpush1.msra.mxu0 0.0
        %1987 = vmatprep.subr.mxu0 0.0
        %1988 = vmatpush1.msra.mxu0 0.0
        %1989 = vmatprep.subr.mxu0 0.0
        %1990 = vmatpush1.msra.mxu0 0.0
        %1991 = vmatprep.subr.mxu0 0.0
        %1992 = vmatpush1.msra.mxu0 0.0
        %1993 = vmatprep.subr.mxu0 0.0
        %1994 = vmatpush1.msra.mxu0 0.0
        %1995 = vmatprep.subr.mxu0 0.0
        %1996 = vmatpush1.msra.mxu0 0.0
        %1997 = vmatprep.subr.mxu0 0.0
        %1998 = vmatpush1.msra.mxu0 0.0
        %1999 = vmatprep.subr.mxu0 0.0
        %2000 = vmatpush1.msra.mxu0 0.0
        %2001 = vmatprep.subr.mxu0 0.0
        %2002 = vmatpush1.msra.mxu0 0.0
        %2003 = vmatprep.mubr.f32.mxu0 0.0
        %2004 = vmatmul.mubr.f32.gmra.mrb[0].mxu0 %v1822
        %v2005 = vpop.f32.mrb[0].mxu0
        %v2006 = vadd.f32 %v1833, %v2005
        %v2007 = vpop.f32.mrb[0].mxu0
        %v2008 = vadd.f32 %v1833, %v2007
        %2009 = vmatprep.mubr.f32.mxu0 0.0
        %2010 = vmatmul.mubr.f32.gmra.mrb[0].mxu0 %v1823
        %v2011 = vpop.f32.mrb[0].mxu0
        %v2012 = vadd.f32 %v1838, %v2011
        %v2013 = vpop.f32.mrb[0].mxu0
        %v2014 = vadd.f32 %v1838, %v2013
        %2015 = vmatprep.mubr.f32.mxu0 0.0
        %2016 = vmatmul.mubr.f32.gmra.mrb[0].mxu0 %v1824
        %v2017 = vpop.f32.mrb[0].mxu0
        %v2018 = vadd.f32 %v1843, %v2017
        %v2019 = vpop.f32.mrb[0].mxu0
        %v2020 = vadd.f32 %v1843, %v2019
        %2021 = vmatprep.mubr.f32.mxu0 0.0
        %2022 = vmatmul.mubr.f32.gmra.mrb[0].mxu0 %v1825
        %v2023 = vpop.f32.mrb[0].mxu0
        %v2024 = vadd.f32 %v1848, %v2023
        %v2025 = vpop.f32.mrb[0].mxu0
        %v2026 = vadd.f32 %v1848, %v2025
        %2027 = vdwg.mxu0
        %2028 = vst [vmem:[%s364] sm:$0xff] %v1917
        %2029 = vst [vmem:[%s364 + $0x8] sm:$0xff] %v1919
        %2030 = vst [vmem:[%s364 + $0x10] sm:$0xff] %v2006
        %2031 = vst [vmem:[%s364 + $0x18] sm:$0xff] %v2008
        %2032 = vst [vmem:[%s364 + $0x20] sm:$0xff] %v1923
        %2033 = vst [vmem:[%s364 + $0x28] sm:$0xff] %v1925
        %2034 = vst [vmem:[%s364 + $0x30] sm:$0xff] %v2012
        %2035 = vst [vmem:[%s364 + $0x38] sm:$0xff] %v2014
        %2036 = vst [vmem:[%s364 + $0x40] sm:$0xff] %v1929
        %2037 = vst [vmem:[%s364 + $0x48] sm:$0xff] %v1931
        %2038 = vst [vmem:[%s364 + $0x50] sm:$0xff] %v2018
        %2039 = vst [vmem:[%s364 + $0x58] sm:$0xff] %v2020
        %2040 = vst [vmem:[%s364 + $0x60] sm:$0xff] %v1935
        %2041 = vst [vmem:[%s364 + $0x68] sm:$0xff] %v1937
        %2042 = vst [vmem:[%s364 + $0x70] sm:$0xff] %v2024
        %2043 = vst [vmem:[%s364 + $0x78] sm:$0xff] %v2026
        %s2044 = sand.u32 %s233, 1
        %s2045 = scalar_lea.sflag [#allocation4], %s2044
        %s2046 = sand.u32 %s233, 1
        %s2047 = smul.addr %s2046, 128
        %s2048 = scalar_lea.vmem [#allocation5], %s2047
        // Predicated region
        $region61: #{tpu_custom_call.1} parent=55 // pred_check
          %p2049 = pneg %p243
        $region62: #{tpu_custom_call.1} parent=55 // pred_check_branch
          %2051 = sbr.rel (%p2049) target = $region64
        $region63: #{tpu_custom_call.1} parent=55 // pred_region
          %s2052 = smul.u32 4, %s26
          %s2054 = ssub.s32 2048, 2048
          %2055 = vsyncadd %s2045, %s2054
          %s2056 = smul.addr %s2052, 128
          %s2057 = scalar_lea.hbm %s9, %s2056
          %s2058 = sshll.u32 %s2048, 4
          %s2059 = int_to_ptr.vmem [resolvable:$true] %s2058
          %2064 = dma.vmem_to_hbm [thread:$0]  %s2059, 2048, %s2057, %s2045, 512, 2048, 32
        $region64: #{tpu_custom_call.1} parent=55 // pred_fallthru
          _
      $region56: #{tpu_custom_call.1} parent=5 // pred_fallthru
        _
      %p2065 = scmp.le.s32.totalorder 2, %s21
      // Predicated region
      $region65: #{tpu_custom_call.1} parent=5 // pred_check
        %p2066 = pneg %p2065
      $region66: #{tpu_custom_call.1} parent=5 // pred_check_branch
        %2068 = sbr.rel (%p2066) target = $region68
      $region67: #{tpu_custom_call.1} parent=5 // pred_region
        %s2069 = ssub.s32 %s21, 2
        // Predicated region
        $region69: #{tpu_custom_call.1} parent=67 // pred_check
          %p2070 = pneg %p249
        $region70: #{tpu_custom_call.1} parent=67 // pred_check_branch
          %2072 = sbr.rel (%p2070) target = $region72
        $region71: #{tpu_custom_call.1} parent=67 // pred_region
          %s2073 = sand.u32 %s234, 1
          %s2074 = scalar_lea.sflag [#allocation4], %s2073
          %s2075 = sand.u32 %s234, 1
          %s2076 = smul.addr %s2075, 128
          %s2077 = scalar_lea.vmem [#allocation5], %s2076
          %2078 = dma.done %s2074, 2048
        $region72: #{tpu_custom_call.1} parent=67 // pred_fallthru
          _
      $region68: #{tpu_custom_call.1} parent=5 // pred_fallthru
        _
    $region6: #{tpu_custom_call.1} parent=1 // loop_footer
      %s25 = sadd.s32 1, %s21
    $region7: #{tpu_custom_call.1} parent=1 // loop_footer_branch
      %20 = sbr.rel target = $region3
    $region8: #{tpu_custom_call.1} parent=1 // loop_exit
      _
    %2079 = vsyncpa [#allocation3], 1
    %s2080 = scalar_lea.sflag [#allocation3], 1
    %2081 = vsyncpa %s2080, 1
    %2082 = vsyncpa [#allocation4], 1
    %s2083 = scalar_lea.sflag [#allocation4], 1
    %2084 = vsyncpa %s2083, 1

</llo_original>
